<compile_context>
chip_gen: v5e
topology: v5e:2x2
jax: 0.10.0
libtpu: 0.0.40
codegen_flags: <defaults>
</compile_context>

<pallas_src>
import numpy as np
import jax
import jax.numpy as jnp
from jax import lax
from jax.experimental import pallas as pl
from jax.experimental.pallas import tpu as pltpu

MINI = 0.001
MAXI = 0.999


def _make_kernel(C, use_b0, tile_n, tiles_per_part, n_rows):
    """Specialize the kernel on static configuration."""

    def kernel(xm_ref, dwi_ref, bt_ref, dirw_ref, std_ref, mean_ref,
               b0_std_ref, b0_mean_ref, num_ref, den_ref, num_acc, den_acc):
        p = pl.program_id(0)          # parallel part (megacore-friendly)
        i = pl.program_id(1)          # reduction step within the part

        @pl.when(i == 0)
        def _():
            num_acc[...] = jnp.zeros_like(num_acc)
            den_acc[...] = jnp.zeros_like(den_acc)

        xm = xm_ref[...]                                        # (tn, F)
        x_sh = xm[:, :C] * std_ref[...] + mean_ref[...]         # (tn, C)
        if use_b0:
            x_b0 = xm[:, C:C + 1] * b0_std_ref[...] + b0_mean_ref[...]
            x = x_sh * x_b0
            w = xm[:, C + 1:C + 2]                              # (tn, 1)
        else:
            x = x_sh
            w = xm[:, C:C + 1]                                  # (tn, 1)

        # SH -> DWI fit on the MXU (bt has zero columns at b0 positions).
        pred = jnp.dot(x, bt_ref[...], preferred_element_type=jnp.float32)
        pred = jnp.clip(pred, MINI, MAXI)                       # (tn, Dt)
        diff = pred - dwi_ref[...]                              # (tn, Dt)

        # Row validity: covers the ragged last tile (N % tile_n != 0) and the
        # clamped overflow tiles created by the parallel split.
        g = p * tiles_per_part + i                              # global tile id
        rows = g * tile_n + lax.broadcasted_iota(jnp.int32, (tile_n, 1), 0)
        valid = rows < n_rows                                   # (tn, 1) bool

        sq = diff * diff * dirw_ref[...] * w                    # (tn, Dt)
        sq = jnp.where(valid, sq, 0.0)
        wv = jnp.where(valid, w, 0.0)

        num_acc[...] += jnp.sum(sq, axis=0, keepdims=True)      # (1, Dt)
        den_acc[...] += jnp.sum(wv, axis=0, keepdims=True)      # (1, 1)

        @pl.when(i == tiles_per_part - 1)
        def _():
            num_ref[...] = jnp.broadcast_to(num_acc[...], num_ref.shape)
            den_ref[...] = jnp.broadcast_to(den_acc[...], den_ref.shape)

    return kernel


def dwi_mse_loss(X, dwi, mask, *, B, where_b0, use_b0=False,
                 mean=None, std=None, b0_mean=None, b0_std=None,
                 tile_n=8192, num_parts=2):
    """Pallas implementation of DWIMSELoss.forward."""
    X = jnp.asarray(X, jnp.float32)
    dwi = jnp.asarray(dwi, jnp.float32)
    mask = jnp.asarray(mask, jnp.float32)
    B = jnp.asarray(B, jnp.float32)
    where_b0 = np.asarray(where_b0, bool)

    assert tile_n % 8 == 0, "tile_n must be a multiple of 8"

    Dt = int(where_b0.size)                    # total DWI directions (incl. b0)
    non_b0 = np.where(~where_b0)[0]            # static integer indices
    C = int(X.shape[-1]) - (1 if use_b0 else 0)  # number of SH coefficients

    # B.T scattered to the full direction width (zero cols at b0 positions)
    # and a static per-direction weight that removes the b0 columns.
    bt_full = jnp.zeros((C, Dt), jnp.float32).at[:, non_b0].set(B.T)
    dir_w = jnp.zeros((1, Dt), jnp.float32).at[:, non_b0].set(1.0)

    # normalization params (identity defaults when not given)
    if (mean is not None) and (std is not None):
        std_v = jnp.asarray(std, jnp.float32).reshape(1, C)
        mean_v = jnp.asarray(mean, jnp.float32).reshape(1, C)
    else:
        std_v = jnp.ones((1, C), jnp.float32)
        mean_v = jnp.zeros((1, C), jnp.float32)
    if use_b0 and (b0_mean is not None) and (b0_std is not None):
        b0_std_v = jnp.asarray(b0_std, jnp.float32).reshape(1, 1)
        b0_mean_v = jnp.asarray(b0_mean, jnp.float32).reshape(1, 1)
    else:
        b0_std_v = jnp.ones((1, 1), jnp.float32)
        b0_mean_v = jnp.zeros((1, 1), jnp.float32)

    # Fuse the narrow streamed inputs into one array: [X_sh | (X_b0) | mask].
    N = int(np.prod(X.shape[:-1]))
    if use_b0:
        xm = jnp.concatenate([X[..., 1:], X[..., :1], mask], axis=-1)
        F = C + 2
    else:
        xm = jnp.concatenate([X, mask], axis=-1)
        F = C + 1
    xm_f = xm.reshape(N, F)
    dwi_f = dwi.reshape(N, Dt)   # full dwi streamed; b0 cols masked in-kernel

    # Grid: (parallel parts, tiles per part). No host-side padding of inputs.
    n_tiles = max(1, (N + tile_n - 1) // tile_n)
    P = max(1, int(num_parts))
    tpp = (n_tiles + P - 1) // P
    last_tile = n_tiles - 1

    def data_idx(p, i):
        g = p * tpp + i
        # Clamp overflow tiles so the DMA stays in bounds; the kernel's row
        # mask (computed from the *unclamped* tile id) zeroes their payload.
        return (jnp.minimum(g, last_tile), 0)

    const_idx = lambda p, i: (0, 0)
    out_idx = lambda p, i: (p, 0)

    kernel = _make_kernel(C, use_b0, tile_n, tpp, N)

    # VMEM budget: 2 streamed inputs x 2 buffers x (tile_n x 128 lanes x 4 B)
    # (every f32 block lane-pads to 128), plus slack for constants/outputs.
    vmem_limit = int(2 * 2 * tile_n * 128 * 4 + (8 << 20))

    num_out, den_out = pl.pallas_call(
        kernel,
        out_shape=(jax.ShapeDtypeStruct((P * 8, Dt), jnp.float32),
                   jax.ShapeDtypeStruct((P * 8, Dt), jnp.float32)),
        grid_spec=pltpu.PrefetchScalarGridSpec(
            num_scalar_prefetch=0,
            grid=(P, tpp),
            in_specs=[
                pl.BlockSpec((tile_n, F), data_idx),    # fused [X | mask]
                pl.BlockSpec((tile_n, Dt), data_idx),   # dwi (all directions)
                pl.BlockSpec((C, Dt), const_idx),       # B.T (zero b0 cols)
                pl.BlockSpec((1, Dt), const_idx),       # direction weights
                pl.BlockSpec((1, C), const_idx),        # std
                pl.BlockSpec((1, C), const_idx),        # mean
                pl.BlockSpec((1, 1), const_idx),        # b0_std
                pl.BlockSpec((1, 1), const_idx),        # b0_mean
            ],
            out_specs=(
                pl.BlockSpec((8, Dt), out_idx),         # per-part num partials
                pl.BlockSpec((8, Dt), out_idx),         # per-part den partials
            ),
            scratch_shapes=[pltpu.VMEM((1, Dt), jnp.float32),
                            pltpu.VMEM((1, 1), jnp.float32)],
        ),
        compiler_params=pltpu.CompilerParams(
            dimension_semantics=("parallel", "arbitrary"),
            vmem_limit_bytes=vmem_limit),
    )(xm_f, dwi_f, bt_full, dir_w, std_v, mean_v, b0_std_v, b0_mean_v)

    num = jnp.sum(num_out.reshape(P, 8, Dt)[:, 0, :])
    den = jnp.sum(den_out.reshape(P, 8, Dt)[:, 0, 0])
    return num / den


def _reference_numpy(X, dwi, mask, B, where_b0, use_b0, mean, std,
                     b0_mean, b0_std):
    """float64 numpy reference of the PyTorch forward."""
    X = np.asarray(X, np.float64)
    dwi = np.asarray(dwi, np.float64)
    mask = np.asarray(mask, np.float64)
    B = np.asarray(B, np.float64)
    if use_b0:
        X_sh, X_b0 = X[..., 1:], X[..., :1]
        if mean is not None and std is not None:
            X_sh = X_sh * np.asarray(std, np.float64) + np.asarray(mean, np.float64)
        if b0_mean is not None and b0_std is not None:
            X_b0 = X_b0 * np.asarray(b0_std, np.float64) + np.asarray(b0_mean, np.float64)
        Xu = X_sh * X_b0
    elif mean is not None and std is not None:
        Xu = X * np.asarray(std, np.float64) + np.asarray(mean, np.float64)
    else:
        Xu = X
    pred = np.clip(np.einsum('...i,ij->...j', Xu, B.T), MINI, MAXI)
    dwi_sel = dwi[..., ~where_b0]
    diff = pred - dwi_sel
    return np.sum(mask * diff * diff) / np.sum(mask)


if __name__ == "__main__":
    key = jax.random.PRNGKey(0)
    kX, kdwi, kmask, kB, kstd, kmean, kX2, kdwi2, kmask2, kB2 = jax.random.split(key, 10)

    # ---- test 1: use_b0=True, multi-tile grid with ragged tail ----
    batch, sx, sy, sz = 2, 12, 12, 12
    C_sh = 15                 # SH order 4 -> 15 coefficients
    n_dirs_total = 64         # total DWI channels (incl. b0s)
    n_b0 = 4
    where_b0 = np.zeros(n_dirs_total, bool)
    where_b0[:n_b0] = True
    D = n_dirs_total - n_b0   # 60 non-b0 directions = rows of B

    B = (jax.random.normal(kB, (D, C_sh)) * 0.2).astype(jnp.float32)
    std = (jnp.abs(jax.random.normal(kstd, (C_sh,))) * 0.2 + 0.05).astype(jnp.float32)
    mean = (jax.random.normal(kmean, (C_sh,)) * 0.05).astype(jnp.float32)
    b0_std = jnp.asarray([0.1], jnp.float32)
    b0_mean = jnp.asarray([1.0], jnp.float32)

    X = jax.random.normal(kX, (batch, sx, sy, sz, 1 + C_sh), jnp.float32)
    dwi = jax.random.uniform(kdwi, (batch, sx, sy, sz, n_dirs_total), jnp.float32)
    mask = (jax.random.uniform(kmask, (batch, sx, sy, sz, 1)) > 0.3).astype(jnp.float32)

    mse = dwi_mse_loss(X, dwi, mask, B=B, where_b0=where_b0, use_b0=True,
                       mean=mean, std=std, b0_mean=b0_mean, b0_std=b0_std,
                       tile_n=512, num_parts=2)
    mse = jax.block_until_ready(mse)
    ref = _reference_numpy(np.asarray(X), np.asarray(dwi), np.asarray(mask),
                           np.asarray(B), where_b0, True,
                           np.asarray(mean), np.asarray(std),
                           np.asarray(b0_mean), np.asarray(b0_std))
    np.testing.assert_allclose(float(mse), float(ref), rtol=1e-3, atol=1e-6)

    # ---- test 2: use_b0=False, no normalization, single big tile ----
    C_sh2, n_dirs2, n_b02 = 6, 45, 5
    where_b0_2 = np.zeros(n_dirs2, bool)
    where_b0_2[:n_b02] = True
    B2 = (jax.random.normal(kB2, (n_dirs2 - n_b02, C_sh2)) * 0.3).astype(jnp.float32)
    X2 = jax.random.normal(kX2, (2, 10, 10, 10, C_sh2), jnp.float32)
    dwi2 = jax.random.uniform(kdwi2, (2, 10, 10, 10, n_dirs2), jnp.float32)
    mask2 = (jax.random.uniform(kmask2, (2, 10, 10, 10, 1)) > 0.5).astype(jnp.float32)

    mse2 = dwi_mse_loss(X2, dwi2, mask2, B=B2, where_b0=where_b0_2,
                        use_b0=False)       # default tile_n=8192, num_parts=2
    mse2 = jax.block_until_ready(mse2)
    ref2 = _reference_numpy(np.asarray(X2), np.asarray(dwi2), np.asarray(mask2),
                            np.asarray(B2), where_b0_2, False,
                            None, None, None, None)
    np.testing.assert_allclose(float(mse2), float(ref2), rtol=1e-3, atol=1e-6)

    print("KERNEL_OK")
</pallas_src>

<mosaic_0001>
module attributes {stable_mosaic.version = 11 : i64} {
  func.func @kernel(%arg0: i32, %arg1: i32, %arg2: memref<512x17xf32, #tpu.memory_space<vmem>>, %arg3: memref<512x64xf32, #tpu.memory_space<vmem>>, %arg4: memref<15x64xf32, #tpu.memory_space<vmem>>, %arg5: memref<1x64xf32, #tpu.memory_space<vmem>>, %arg6: memref<1x15xf32, #tpu.memory_space<vmem>>, %arg7: memref<1x15xf32, #tpu.memory_space<vmem>>, %arg8: memref<1x1xf32, #tpu.memory_space<vmem>>, %arg9: memref<1x1xf32, #tpu.memory_space<vmem>>, %arg10: memref<8x64xf32, #tpu.memory_space<vmem>>, %arg11: memref<8x64xf32, #tpu.memory_space<vmem>>, %arg12: memref<1x64xf32, #tpu.memory_space<vmem>>, %arg13: memref<1x1xf32, #tpu.memory_space<vmem>>) attributes {dimension_semantics = [#tpu.dimension_semantics<parallel>, #tpu.dimension_semantics<arbitrary>], iteration_bounds = array<i64: 2, 4>, scalar_prefetch = 0 : i64, scratch_operands = 2 : i64, tpu.core_type = #tpu.core_type<tc>, window_params = [{transform_indices = @transform_0, window_bounds = array<i64: 512, 17>}, {transform_indices = @transform_1, window_bounds = array<i64: 512, 64>}, {pipeline_mode = #tpu.pipeline_mode<synchronous>, transform_indices = @transform_2, window_bounds = array<i64: 15, 64>}, {pipeline_mode = #tpu.pipeline_mode<synchronous>, transform_indices = @transform_3, window_bounds = array<i64: 1, 64>}, {pipeline_mode = #tpu.pipeline_mode<synchronous>, transform_indices = @transform_4, window_bounds = array<i64: 1, 15>}, {pipeline_mode = #tpu.pipeline_mode<synchronous>, transform_indices = @transform_5, window_bounds = array<i64: 1, 15>}, {pipeline_mode = #tpu.pipeline_mode<synchronous>, transform_indices = @transform_6, window_bounds = array<i64: 1, 1>}, {pipeline_mode = #tpu.pipeline_mode<synchronous>, transform_indices = @transform_7, window_bounds = array<i64: 1, 1>}, {transform_indices = @transform_8, window_bounds = array<i64: 8, 64>}, {transform_indices = @transform_9, window_bounds = array<i64: 8, 64>}]} {
    %c0_i32 = arith.constant 0 : i32
    %0 = arith.cmpi eq, %arg1, %c0_i32 : i32
    %1 = arith.extui %0 : i1 to i32
    %c0_i32_0 = arith.constant 0 : i32
    %2 = arith.cmpi ne, %1, %c0_i32_0 : i32
    scf.if %2 {
      %cst_31 = arith.constant 0.000000e+00 : f32
      %62 = vector.broadcast %cst_31 : f32 to vector<1x64xf32>
      %c0_32 = arith.constant 0 : index
      %c0_33 = arith.constant 0 : index
      %63 = vector.load %arg12[%c0_32, %c0_33] : memref<1x64xf32, #tpu.memory_space<vmem>>, vector<1x64xf32>
      tpu.vector_store %arg12[%c0_32, %c0_33], %62 {strides = array<i32>} : memref<1x64xf32, #tpu.memory_space<vmem>>, vector<1x64xf32>,
      %cst_34 = arith.constant 0.000000e+00 : f32
      %64 = vector.broadcast %cst_34 : f32 to vector<1x1xf32>
      %c0_35 = arith.constant 0 : index
      %c0_36 = arith.constant 0 : index
      %65 = vector.load %arg13[%c0_35, %c0_36] : memref<1x1xf32, #tpu.memory_space<vmem>>, vector<1x1xf32>
      tpu.vector_store %arg13[%c0_35, %c0_36], %64 {strides = array<i32>} : memref<1x1xf32, #tpu.memory_space<vmem>>, vector<1x1xf32>,
    } else {
    }
    %c0 = arith.constant 0 : index
    %c0_1 = arith.constant 0 : index
    %3 = vector.load %arg2[%c0, %c0_1] : memref<512x17xf32, #tpu.memory_space<vmem>>, vector<512x17xf32>
    %4 = vector.extract_strided_slice %3 {offsets = [0, 0], sizes = [512, 15], strides = [1, 1]} : vector<512x17xf32> to vector<512x15xf32>
    %c0_2 = arith.constant 0 : index
    %c0_3 = arith.constant 0 : index
    %5 = vector.load %arg6[%c0_2, %c0_3] : memref<1x15xf32, #tpu.memory_space<vmem>>, vector<1x15xf32>
    %6 = vector.broadcast %5 : vector<1x15xf32> to vector<512x15xf32>
    %7 = arith.mulf %4, %6 : vector<512x15xf32>
    %c0_4 = arith.constant 0 : index
    %c0_5 = arith.constant 0 : index
    %8 = vector.load %arg7[%c0_4, %c0_5] : memref<1x15xf32, #tpu.memory_space<vmem>>, vector<1x15xf32>
    %9 = vector.broadcast %8 : vector<1x15xf32> to vector<512x15xf32>
    %10 = arith.addf %7, %9 : vector<512x15xf32>
    %11 = vector.extract_strided_slice %3 {offsets = [0, 15], sizes = [512, 1], strides = [1, 1]} : vector<512x17xf32> to vector<512x1xf32>
    %c0_6 = arith.constant 0 : index
    %c0_7 = arith.constant 0 : index
    %12 = vector.load %arg8[%c0_6, %c0_7] : memref<1x1xf32, #tpu.memory_space<vmem>>, vector<1x1xf32>
    %13 = vector.broadcast %12 : vector<1x1xf32> to vector<512x1xf32>
    %14 = arith.mulf %11, %13 : vector<512x1xf32>
    %c0_8 = arith.constant 0 : index
    %c0_9 = arith.constant 0 : index
    %15 = vector.load %arg9[%c0_8, %c0_9] : memref<1x1xf32, #tpu.memory_space<vmem>>, vector<1x1xf32>
    %16 = vector.broadcast %15 : vector<1x1xf32> to vector<512x1xf32>
    %17 = arith.addf %14, %16 : vector<512x1xf32>
    %18 = vector.broadcast %17 : vector<512x1xf32> to vector<512x15xf32>
    %19 = arith.mulf %10, %18 : vector<512x15xf32>
    %20 = vector.extract_strided_slice %3 {offsets = [0, 16], sizes = [512, 1], strides = [1, 1]} : vector<512x17xf32> to vector<512x1xf32>
    %c0_10 = arith.constant 0 : index
    %c0_11 = arith.constant 0 : index
    %21 = vector.load %arg4[%c0_10, %c0_11] : memref<15x64xf32, #tpu.memory_space<vmem>>, vector<15x64xf32>
    %cst = arith.constant dense<0.000000e+00> : vector<512x64xf32>
    %22 = tpu.matmul %19, %21, %cst {dimension_numbers = #tpu.dot_dimension_numbers<[1], [0], [0], [1], [0, 0, 1, 1], [], []>} : vector<512x15xf32>, vector<15x64xf32>, vector<512x64xf32> -> vector<512x64xf32>
    %cst_12 = arith.constant 1.000000e-03 : f32
    %cst_13 = arith.constant 9.990000e-01 : f32
    %23 = vector.broadcast %cst_12 : f32 to vector<512x64xf32>
    %24 = arith.maximumf %23, %22 : vector<512x64xf32>
    %25 = vector.broadcast %cst_13 : f32 to vector<512x64xf32>
    %26 = arith.minimumf %25, %24 : vector<512x64xf32>
    %c0_14 = arith.constant 0 : index
    %c0_15 = arith.constant 0 : index
    %27 = vector.load %arg3[%c0_14, %c0_15] : memref<512x64xf32, #tpu.memory_space<vmem>>, vector<512x64xf32>
    %28 = arith.subf %26, %27 : vector<512x64xf32>
    %c4_i32 = arith.constant 4 : i32
    %29 = arith.muli %arg0, %c4_i32 : i32
    %30 = arith.addi %29, %arg1 : i32
    %c512_i32 = arith.constant 512 : i32
    %31 = arith.muli %30, %c512_i32 : i32
    %32 = tpu.iota {dimensions = array<i32: 0>} : vector<512x1xi32>
    %33 = vector.broadcast %31 : i32 to vector<512x1xi32>
    %34 = arith.addi %33, %32 : vector<512x1xi32>
    %c3456_i32 = arith.constant 3456 : i32
    %35 = vector.broadcast %c3456_i32 : i32 to vector<512x1xi32>
    %36 = arith.cmpi slt, %34, %35 : vector<512x1xi32>
    %37 = arith.mulf %28, %28 : vector<512x64xf32>
    %c0_16 = arith.constant 0 : index
    %c0_17 = arith.constant 0 : index
    %38 = vector.load %arg5[%c0_16, %c0_17] : memref<1x64xf32, #tpu.memory_space<vmem>>, vector<1x64xf32>
    %39 = vector.broadcast %38 : vector<1x64xf32> to vector<512x64xf32>
    %40 = arith.mulf %37, %39 : vector<512x64xf32>
    %41 = vector.broadcast %20 : vector<512x1xf32> to vector<512x64xf32>
    %42 = arith.mulf %40, %41 : vector<512x64xf32>
    %cst_18 = arith.constant 0.000000e+00 : f32
    %43 = vector.shape_cast %36 : vector<512x1xi1> to vector<512x1xi1>
    %44 = vector.broadcast %43 : vector<512x1xi1> to vector<512x64xi1>
    %45 = vector.broadcast %cst_18 : f32 to vector<512x64xf32>
    %46 = arith.select %44, %42, %45 : vector<512x64xi1>, vector<512x64xf32>
    %cst_19 = arith.constant 0.000000e+00 : f32
    %47 = vector.broadcast %cst_19 : f32 to vector<512x1xf32>
    %48 = arith.select %36, %20, %47 : vector<512x1xi1>, vector<512x1xf32>
    %c0_20 = arith.constant 0 : index
    %c0_21 = arith.constant 0 : index
    %49 = vector.load %arg12[%c0_20, %c0_21] : memref<1x64xf32, #tpu.memory_space<vmem>>, vector<1x64xf32>
    %cst_22 = arith.constant dense<0.000000e+00> : vector<64xf32>
    %50 = vector.multi_reduction <add>, %46, %cst_22 [0] : vector<512x64xf32> to vector<64xf32>
    %51 = vector.shape_cast %50 : vector<64xf32> to vector<1x64xf32>
    %52 = arith.addf %49, %51 : vector<1x64xf32>
    %c0_23 = arith.constant 0 : index
    %c0_24 = arith.constant 0 : index
    %53 = vector.load %arg12[%c0_23, %c0_24] : memref<1x64xf32, #tpu.memory_space<vmem>>, vector<1x64xf32>
    tpu.vector_store %arg12[%c0_23, %c0_24], %52 {strides = array<i32>} : memref<1x64xf32, #tpu.memory_space<vmem>>, vector<1x64xf32>,
    %c0_25 = arith.constant 0 : index
    %c0_26 = arith.constant 0 : index
    %54 = vector.load %arg13[%c0_25, %c0_26] : memref<1x1xf32, #tpu.memory_space<vmem>>, vector<1x1xf32>
    %cst_27 = arith.constant dense<0.000000e+00> : vector<1xf32>
    %55 = vector.multi_reduction <add>, %48, %cst_27 [0] : vector<512x1xf32> to vector<1xf32>
    %56 = vector.shape_cast %55 : vector<1xf32> to vector<1x1xf32>
    %57 = arith.addf %54, %56 : vector<1x1xf32>
    %c0_28 = arith.constant 0 : index
    %c0_29 = arith.constant 0 : index
    %58 = vector.load %arg13[%c0_28, %c0_29] : memref<1x1xf32, #tpu.memory_space<vmem>>, vector<1x1xf32>
    tpu.vector_store %arg13[%c0_28, %c0_29], %57 {strides = array<i32>} : memref<1x1xf32, #tpu.memory_space<vmem>>, vector<1x1xf32>,
    %c3_i32 = arith.constant 3 : i32
    %59 = arith.cmpi eq, %arg1, %c3_i32 : i32
    %60 = arith.extui %59 : i1 to i32
    %c0_i32_30 = arith.constant 0 : i32
    %61 = arith.cmpi ne, %60, %c0_i32_30 : i32
    scf.if %61 {
      %c0_31 = arith.constant 0 : index
      %c0_32 = arith.constant 0 : index
      %62 = vector.load %arg12[%c0_31, %c0_32] : memref<1x64xf32, #tpu.memory_space<vmem>>, vector<1x64xf32>
      %63 = vector.shape_cast %62 : vector<1x64xf32> to vector<1x64xf32>
      %64 = vector.broadcast %63 : vector<1x64xf32> to vector<8x64xf32>
      %c0_33 = arith.constant 0 : index
      %c0_34 = arith.constant 0 : index
      %65 = vector.load %arg10[%c0_33, %c0_34] : memref<8x64xf32, #tpu.memory_space<vmem>>, vector<8x64xf32>
      tpu.vector_store %arg10[%c0_33, %c0_34], %64 {strides = array<i32>} : memref<8x64xf32, #tpu.memory_space<vmem>>, vector<8x64xf32>,
      %c0_35 = arith.constant 0 : index
      %c0_36 = arith.constant 0 : index
      %66 = vector.load %arg13[%c0_35, %c0_36] : memref<1x1xf32, #tpu.memory_space<vmem>>, vector<1x1xf32>
      %67 = vector.shape_cast %66 : vector<1x1xf32> to vector<1x1xf32>
      %68 = vector.broadcast %67 : vector<1x1xf32> to vector<8x64xf32>
      %c0_37 = arith.constant 0 : index
      %c0_38 = arith.constant 0 : index
      %69 = vector.load %arg11[%c0_37, %c0_38] : memref<8x64xf32, #tpu.memory_space<vmem>>, vector<8x64xf32>
      tpu.vector_store %arg11[%c0_37, %c0_38], %68 {strides = array<i32>} : memref<8x64xf32, #tpu.memory_space<vmem>>, vector<8x64xf32>,
    } else {
    }
    return
  }
  func.func @transform_0(%arg0: i32, %arg1: i32) -> (i32, i32) {
    %c4_i32 = arith.constant 4 : i32
    %0 = arith.muli %arg0, %c4_i32 : i32
    %1 = arith.addi %0, %arg1 : i32
    %c6_i32 = arith.constant 6 : i32
    %2 = arith.minsi %1, %c6_i32 : i32
    %c0_i32 = arith.constant 0 : i32
    %c0_i32_0 = arith.constant 0 : i32
    return %2, %c0_i32 : i32, i32
  }
  func.func @transform_1(%arg0: i32, %arg1: i32) -> (i32, i32) {
    %c4_i32 = arith.constant 4 : i32
    %0 = arith.muli %arg0, %c4_i32 : i32
    %1 = arith.addi %0, %arg1 : i32
    %c6_i32 = arith.constant 6 : i32
    %2 = arith.minsi %1, %c6_i32 : i32
    %c0_i32 = arith.constant 0 : i32
    %c0_i32_0 = arith.constant 0 : i32
    return %2, %c0_i32 : i32, i32
  }
  func.func @transform_2(%arg0: i32, %arg1: i32) -> (i32, i32) {
    %c0_i32 = arith.constant 0 : i32
    %c0_i32_0 = arith.constant 0 : i32
    %c0_i32_1 = arith.constant 0 : i32
    return %c0_i32, %c0_i32_0 : i32, i32
  }
  func.func @transform_3(%arg0: i32, %arg1: i32) -> (i32, i32) {
    %c0_i32 = arith.constant 0 : i32
    %c0_i32_0 = arith.constant 0 : i32
    %c0_i32_1 = arith.constant 0 : i32
    return %c0_i32, %c0_i32_0 : i32, i32
  }
  func.func @transform_4(%arg0: i32, %arg1: i32) -> (i32, i32) {
    %c0_i32 = arith.constant 0 : i32
    %c0_i32_0 = arith.constant 0 : i32
    %c0_i32_1 = arith.constant 0 : i32
    return %c0_i32, %c0_i32_0 : i32, i32
  }
  func.func @transform_5(%arg0: i32, %arg1: i32) -> (i32, i32) {
    %c0_i32 = arith.constant 0 : i32
    %c0_i32_0 = arith.constant 0 : i32
    %c0_i32_1 = arith.constant 0 : i32
    return %c0_i32, %c0_i32_0 : i32, i32
  }
  func.func @transform_6(%arg0: i32, %arg1: i32) -> (i32, i32) {
    %c0_i32 = arith.constant 0 : i32
    %c0_i32_0 = arith.constant 0 : i32
    %c0_i32_1 = arith.constant 0 : i32
    return %c0_i32, %c0_i32_0 : i32, i32
  }
  func.func @transform_7(%arg0: i32, %arg1: i32) -> (i32, i32) {
    %c0_i32 = arith.constant 0 : i32
    %c0_i32_0 = arith.constant 0 : i32
    %c0_i32_1 = arith.constant 0 : i32
    return %c0_i32, %c0_i32_0 : i32, i32
  }
  func.func @transform_8(%arg0: i32, %arg1: i32) -> (i32, i32) {
    %c0_i32 = arith.constant 0 : i32
    %c0_i32_0 = arith.constant 0 : i32
    return %arg0, %c0_i32 : i32, i32
  }
  func.func @transform_9(%arg0: i32, %arg1: i32) -> (i32, i32) {
    %c0_i32 = arith.constant 0 : i32
    %c0_i32_0 = arith.constant 0 : i32
    return %arg0, %c0_i32 : i32, i32
  }
}

</mosaic_0001>

<llo_original>
// kernel: tpu_custom_call.1
$region0: #{tpu_custom_call.1}
  #allocation0 [shape = 'u32[]', space=smem, size = 0x4, offset = 0x4, fixed_abs, tag = 'smem constant byte address 0x4 - core index']
  #allocation1 [shape = 'u32[72,128]{1,0:T(1,128)}', space=vmem, size = 0x9000, scoped, tag = 'internal scratch']
  #allocation2 [shape = 'f32[1,64]{1,0:T(1,128)}', space=vmem, size = 0x200, scoped, tag = 'scratch operand']
  #allocation3 [shape = 'f32[1,1]{1,0:T(1,128)}', space=vmem, size = 0x200, scoped, tag = 'scratch operand']
  #allocation4 [shape = 'f32[1,1]{1,0:T(1,128)S(1)}', space=vmem, size = 0x200, scoped, tag = 'scoped memory for tpu_custom_call.1']
  #allocation5 [shape = 'f32[1,1]{1,0:T(1,128)S(1)}', space=vmem, size = 0x200, scoped, tag = 'scoped memory for tpu_custom_call.1']
  %s0 = inlined_call_operand.vmem [shape: f32[3456,17], index: 0, kind: input, shape index: {}]
  %s1 = inlined_call_operand.vmem [shape: f32[3456,64], index: 1, kind: input, shape index: {}]
  %s2 = inlined_call_operand.vmem [shape: f32[15,64], index: 2, kind: input, shape index: {}]
  %s3 = inlined_call_operand.vmem [shape: f32[1,64], index: 3, kind: input, shape index: {}]
  %s4 = inlined_call_operand.vmem [shape: f32[1,15], index: 4, kind: input, shape index: {}]
  %s5 = inlined_call_operand.vmem [shape: f32[1,15], index: 5, kind: input, shape index: {}]
  %s6 = inlined_call_operand.<no memory space> [shape: f32[1,1], index: 6, kind: input, shape index: {}]
  %s7 = inlined_call_operand.<no memory space> [shape: f32[1,1], index: 7, kind: input, shape index: {}]
  %s8 = inlined_call_operand.hbm [shape: f32[16,64], index: 8, kind: output, shape index: {0}]
  %s9 = inlined_call_operand.hbm [shape: f32[16,64], index: 9, kind: output, shape index: {1}]
  %10 = xla_tuple %s8, %s9
  %s11 = sld [smem:[#allocation0]]
  $region81: #{tpu_custom_call.1} parent=0
    _
  %s13 = ssub.s32 1, %s11
  %s14 = scalar_select 0, %s13, %s11
  %v15 = vstv %s6
  %16 = vst [vmem:[#allocation4] sm:$0x1] %v15
  %v17 = vstv %s7
  %18 = vst [vmem:[#allocation5] sm:$0x1] %v17
  $region1: #{tpu_custom_call.1} parent=0
    #allocation6 [shape = 'u8[8192]{0}', space=vmem, size = 0x2000, scoped, tag = 'output window, operand 0']
    #allocation7 [shape = 's32[2]{0}', space=sflag, size = 0x8, scoped, tag = 'scoped memory for tpu_custom_call.1']
    #allocation8 [shape = 'u8[8192]{0}', space=vmem, size = 0x2000, scoped, tag = 'output window, operand 1']
    #allocation9 [shape = 's32[2]{0}', space=sflag, size = 0x8, scoped, tag = 'scoped memory for tpu_custom_call.1']
    %19 = vsyncpa [#allocation7], 0
    %s20 = scalar_lea.sflag [#allocation7], 1
    %21 = vsyncpa %s20, 0
    %22 = vsyncpa [#allocation9], 0
    %s23 = scalar_lea.sflag [#allocation9], 1
    %24 = vsyncpa %s23, 0
    loop: start=0, step=1, limit=10
    $region2: #{tpu_custom_call.1} parent=1 // loop_pre_header
      _
    $region3: #{tpu_custom_call.1} parent=1 // loop_header
      %s26 = sphi 0, %s30
      %p27 = scmp.ge.s32.totalorder %s26, 10
      %s33 = sphi 0, %s45
      %s34 = sphi 0, %s41
      %s35 = sphi 0, %s33
      %s36 = sphi 0, %s34
      %s37 = sphi 0, %s35
      %s38 = sphi 0, %s36
      %s56 = sphi 0, %s58
      %s59 = sphi 0, %s56
      %s60 = sphi 0, %s59
      %s76 = sphi 0, %s60
      %s90 = sphi 0, %s92
      %s93 = sphi 0, %s90
      %s94 = sphi 0, %s93
      %s110 = sphi 0, %s94
      %s114 = sphi 0, %s114
      %s116 = sphi 0, %s114
      %s117 = sphi 0, %s116
      %s131 = sphi 0, %s117
      %s135 = sphi 0, %s135
      %s137 = sphi 0, %s135
      %s138 = sphi 0, %s137
      %s152 = sphi 0, %s138
      %s156 = sphi 0, %s156
      %s158 = sphi 0, %s156
      %s159 = sphi 0, %s158
      %s173 = sphi 0, %s159
      %s177 = sphi 0, %s177
      %s179 = sphi 0, %s177
      %s180 = sphi 0, %s179
      %s194 = sphi 0, %s180
      %s198 = sphi 0, %s198
      %s200 = sphi 0, %s198
      %s201 = sphi 0, %s200
      %s215 = sphi 0, %s201
      %s219 = sphi 0, %s219
      %s221 = sphi 0, %s219
      %s222 = sphi 0, %s221
      %s236 = sphi 0, %s222
      %s242 = sphi 0, %s244
      %s245 = sphi 0, %s242
      %s246 = sphi 0, %s245
      %s262 = sphi 0, %s246
      %s268 = sphi 0, %s270
      %s271 = sphi 0, %s268
      %s272 = sphi 0, %s271
      %s288 = sphi 0, %s272
    $region4: #{tpu_custom_call.1} parent=1 // loop_header_branch
      %29 = sbr.rel (%p27) target = $region8
    $region5: #{tpu_custom_call.1} parent=1 // loop_body
      %s31 = ssub.s32 %s26, 1
      %s32 = ssub.s32 %s26, 2
      %s39 = sadd.s32 1, %s34
      %p40 = scmp.ge.s32.totalorder %s39, 4
      %s41 = scalar_select %p40, 0, %s39
      %s42 = sadd.s32 1, %s33
      %s43 = scalar_select %p40, %s42, %s33
      %p44 = scmp.ge.s32.totalorder %s43, 2
      %s45 = scalar_select %p44, 0, %s43
      %s46 = smul.u32 %s33, 4
      %s47 = sadd.s32 %s46, %s34
      %p48 = scmp.lt.s32.totalorder %s47, 6
      %s49 = scalar_select %p48, %s47, 6
      %s50 = smul.u32 %s45, 4
      %s51 = sadd.s32 %s50, %s41
      %p52 = scmp.lt.s32.totalorder %s51, 6
      %s53 = scalar_select %p52, %s51, 6
      %s54 = ssub.s32 %s49, %s53
      %p55 = scmp.eq.s32.totalorder %s54, 0
      %s57 = sadd.s32 %s56, 1
      %s58 = scalar_select %p55, %s56, %s57
      %p61 = pneg %p55
      %p62 = scmp.eq.s32.totalorder %s26, 7
      %p63 = por %p61, %p62
      %p64 = scmp.ne.s32.totalorder %s56, %s59
      %p65 = scmp.eq.s32.totalorder %s26, 0
      %p66 = por %p64, %p65
      %p67 = scmp.ne.s32.totalorder %s56, %s59
      %p68 = scmp.eq.s32.totalorder %s31, 7
      %p69 = por %p67, %p68
      %p70 = scmp.ne.s32.totalorder %s59, %s60
      %p71 = scmp.eq.s32.totalorder %s31, 0
      %p72 = por %p70, %p71
      %p73 = scmp.ne.s32.totalorder %s59, %s60
      %p74 = scmp.eq.s32.totalorder %s32, 7
      %p75 = por %p73, %p74
      %p77 = scmp.ne.s32.totalorder %s60, %s76
      %p78 = scmp.eq.s32.totalorder %s32, 0
      %p79 = por %p77, %p78
      %s80 = smul.u32 %s33, 4
      %s81 = sadd.s32 %s80, %s34
      %p82 = scmp.lt.s32.totalorder %s81, 6
      %s83 = scalar_select %p82, %s81, 6
      %s84 = smul.u32 %s45, 4
      %s85 = sadd.s32 %s84, %s41
      %p86 = scmp.lt.s32.totalorder %s85, 6
      %s87 = scalar_select %p86, %s85, 6
      %s88 = ssub.s32 %s83, %s87
      %p89 = scmp.eq.s32.totalorder %s88, 0
      %s91 = sadd.s32 %s90, 1
      %s92 = scalar_select %p89, %s90, %s91
      %p95 = pneg %p89
      %p96 = scmp.eq.s32.totalorder %s26, 7
      %p97 = por %p95, %p96
      %p98 = scmp.ne.s32.totalorder %s90, %s93
      %p99 = scmp.eq.s32.totalorder %s26, 0
      %p100 = por %p98, %p99
      %p101 = scmp.ne.s32.totalorder %s90, %s93
      %p102 = scmp.eq.s32.totalorder %s31, 7
      %p103 = por %p101, %p102
      %p104 = scmp.ne.s32.totalorder %s93, %s94
      %p105 = scmp.eq.s32.totalorder %s31, 0
      %p106 = por %p104, %p105
      %p107 = scmp.ne.s32.totalorder %s93, %s94
      %p108 = scmp.eq.s32.totalorder %s32, 7
      %p109 = por %p107, %p108
      %p111 = scmp.ne.s32.totalorder %s94, %s110
      %p112 = scmp.eq.s32.totalorder %s32, 0
      %p113 = por %p111, %p112
      %s115 = sadd.s32 %s114, 1
      %p118 = scmp.eq.s32.totalorder %s26, 7
      %p119 = scmp.ne.s32.totalorder %s114, %s116
      %p120 = scmp.eq.s32.totalorder %s26, 0
      %p121 = por %p119, %p120
      %p122 = scmp.ne.s32.totalorder %s114, %s116
      %p123 = scmp.eq.s32.totalorder %s31, 7
      %p124 = por %p122, %p123
      %p125 = scmp.ne.s32.totalorder %s116, %s117
      %p126 = scmp.eq.s32.totalorder %s31, 0
      %p127 = por %p125, %p126
      %p128 = scmp.ne.s32.totalorder %s116, %s117
      %p129 = scmp.eq.s32.totalorder %s32, 7
      %p130 = por %p128, %p129
      %p132 = scmp.ne.s32.totalorder %s117, %s131
      %p133 = scmp.eq.s32.totalorder %s32, 0
      %p134 = por %p132, %p133
      %s136 = sadd.s32 %s135, 1
      %p139 = scmp.eq.s32.totalorder %s26, 7
      %p140 = scmp.ne.s32.totalorder %s135, %s137
      %p141 = scmp.eq.s32.totalorder %s26, 0
      %p142 = por %p140, %p141
      %p143 = scmp.ne.s32.totalorder %s135, %s137
      %p144 = scmp.eq.s32.totalorder %s31, 7
      %p145 = por %p143, %p144
      %p146 = scmp.ne.s32.totalorder %s137, %s138
      %p147 = scmp.eq.s32.totalorder %s31, 0
      %p148 = por %p146, %p147
      %p149 = scmp.ne.s32.totalorder %s137, %s138
      %p150 = scmp.eq.s32.totalorder %s32, 7
      %p151 = por %p149, %p150
      %p153 = scmp.ne.s32.totalorder %s138, %s152
      %p154 = scmp.eq.s32.totalorder %s32, 0
      %p155 = por %p153, %p154
      %s157 = sadd.s32 %s156, 1
      %p160 = scmp.eq.s32.totalorder %s26, 7
      %p161 = scmp.ne.s32.totalorder %s156, %s158
      %p162 = scmp.eq.s32.totalorder %s26, 0
      %p163 = por %p161, %p162
      %p164 = scmp.ne.s32.totalorder %s156, %s158
      %p165 = scmp.eq.s32.totalorder %s31, 7
      %p166 = por %p164, %p165
      %p167 = scmp.ne.s32.totalorder %s158, %s159
      %p168 = scmp.eq.s32.totalorder %s31, 0
      %p169 = por %p167, %p168
      %p170 = scmp.ne.s32.totalorder %s158, %s159
      %p171 = scmp.eq.s32.totalorder %s32, 7
      %p172 = por %p170, %p171
      %p174 = scmp.ne.s32.totalorder %s159, %s173
      %p175 = scmp.eq.s32.totalorder %s32, 0
      %p176 = por %p174, %p175
      %s178 = sadd.s32 %s177, 1
      %p181 = scmp.eq.s32.totalorder %s26, 7
      %p182 = scmp.ne.s32.totalorder %s177, %s179
      %p183 = scmp.eq.s32.totalorder %s26, 0
      %p184 = por %p182, %p183
      %p185 = scmp.ne.s32.totalorder %s177, %s179
      %p186 = scmp.eq.s32.totalorder %s31, 7
      %p187 = por %p185, %p186
      %p188 = scmp.ne.s32.totalorder %s179, %s180
      %p189 = scmp.eq.s32.totalorder %s31, 0
      %p190 = por %p188, %p189
      %p191 = scmp.ne.s32.totalorder %s179, %s180
      %p192 = scmp.eq.s32.totalorder %s32, 7
      %p193 = por %p191, %p192
      %p195 = scmp.ne.s32.totalorder %s180, %s194
      %p196 = scmp.eq.s32.totalorder %s32, 0
      %p197 = por %p195, %p196
      %s199 = sadd.s32 %s198, 1
      %p202 = scmp.eq.s32.totalorder %s26, 7
      %p203 = scmp.ne.s32.totalorder %s198, %s200
      %p204 = scmp.eq.s32.totalorder %s26, 0
      %p205 = por %p203, %p204
      %p206 = scmp.ne.s32.totalorder %s198, %s200
      %p207 = scmp.eq.s32.totalorder %s31, 7
      %p208 = por %p206, %p207
      %p209 = scmp.ne.s32.totalorder %s200, %s201
      %p210 = scmp.eq.s32.totalorder %s31, 0
      %p211 = por %p209, %p210
      %p212 = scmp.ne.s32.totalorder %s200, %s201
      %p213 = scmp.eq.s32.totalorder %s32, 7
      %p214 = por %p212, %p213
      %p216 = scmp.ne.s32.totalorder %s201, %s215
      %p217 = scmp.eq.s32.totalorder %s32, 0
      %p218 = por %p216, %p217
      %s220 = sadd.s32 %s219, 1
      %p223 = scmp.eq.s32.totalorder %s26, 7
      %p224 = scmp.ne.s32.totalorder %s219, %s221
      %p225 = scmp.eq.s32.totalorder %s26, 0
      %p226 = por %p224, %p225
      %p227 = scmp.ne.s32.totalorder %s219, %s221
      %p228 = scmp.eq.s32.totalorder %s31, 7
      %p229 = por %p227, %p228
      %p230 = scmp.ne.s32.totalorder %s221, %s222
      %p231 = scmp.eq.s32.totalorder %s31, 0
      %p232 = por %p230, %p231
      %p233 = scmp.ne.s32.totalorder %s221, %s222
      %p234 = scmp.eq.s32.totalorder %s32, 7
      %p235 = por %p233, %p234
      %p237 = scmp.ne.s32.totalorder %s222, %s236
      %p238 = scmp.eq.s32.totalorder %s32, 0
      %p239 = por %p237, %p238
      %s240 = ssub.s32 %s33, %s45
      %p241 = scmp.eq.s32.totalorder %s240, 0
      %s243 = sadd.s32 %s242, 1
      %s244 = scalar_select %p241, %s242, %s243
      %p247 = pneg %p241
      %p248 = scmp.eq.s32.totalorder %s26, 7
      %p249 = por %p247, %p248
      %p250 = scmp.ne.s32.totalorder %s242, %s245
      %p251 = scmp.eq.s32.totalorder %s26, 0
      %p252 = por %p250, %p251
      %p253 = scmp.ne.s32.totalorder %s242, %s245
      %p254 = scmp.eq.s32.totalorder %s31, 7
      %p255 = por %p253, %p254
      %p256 = scmp.ne.s32.totalorder %s245, %s246
      %p257 = scmp.eq.s32.totalorder %s31, 0
      %p258 = por %p256, %p257
      %p259 = scmp.ne.s32.totalorder %s245, %s246
      %p260 = scmp.eq.s32.totalorder %s32, 7
      %p261 = por %p259, %p260
      %p263 = scmp.ne.s32.totalorder %s246, %s262
      %p264 = scmp.eq.s32.totalorder %s32, 0
      %p265 = por %p263, %p264
      %s266 = ssub.s32 %s33, %s45
      %p267 = scmp.eq.s32.totalorder %s266, 0
      %s269 = sadd.s32 %s268, 1
      %s270 = scalar_select %p267, %s268, %s269
      %p273 = pneg %p267
      %p274 = scmp.eq.s32.totalorder %s26, 7
      %p275 = por %p273, %p274
      %p276 = scmp.ne.s32.totalorder %s268, %s271
      %p277 = scmp.eq.s32.totalorder %s26, 0
      %p278 = por %p276, %p277
      %p279 = scmp.ne.s32.totalorder %s268, %s271
      %p280 = scmp.eq.s32.totalorder %s31, 7
      %p281 = por %p279, %p280
      %p282 = scmp.ne.s32.totalorder %s271, %s272
      %p283 = scmp.eq.s32.totalorder %s31, 0
      %p284 = por %p282, %p283
      %p285 = scmp.ne.s32.totalorder %s271, %s272
      %p286 = scmp.eq.s32.totalorder %s32, 7
      %p287 = por %p285, %p286
      %p289 = scmp.ne.s32.totalorder %s272, %s288
      %p290 = scmp.eq.s32.totalorder %s32, 0
      %p291 = por %p289, %p290
      %p292 = scmp.le.s32.totalorder 1, %s26
      %p293 = scmp.lt.s32.totalorder %s26, 9
      %p294 = pnand %p292, %p293
      %p295 = pneg %p294
      // Predicated region
      $region9: #{tpu_custom_call.1} parent=5 // pred_check
        _
      $region10: #{tpu_custom_call.1} parent=5 // pred_check_branch
        %297 = sbr.rel (%p294) target = $region12
      $region11: #{tpu_custom_call.1} parent=5 // pred_region
        %s298 = ssub.s32 %s26, 1
        // Predicated region
        $region13: #{tpu_custom_call.1} parent=11 // pred_check
          %p299 = pneg %p127
        $region14: #{tpu_custom_call.1} parent=11 // pred_check_branch
          %301 = sbr.rel (%p299) target = $region16
        $region15: #{tpu_custom_call.1} parent=11 // pred_region
          _
        $region16: #{tpu_custom_call.1} parent=11 // pred_fallthru
          _
        // Predicated region
        $region17: #{tpu_custom_call.1} parent=11 // pred_check
          %p302 = pneg %p148
        $region18: #{tpu_custom_call.1} parent=11 // pred_check_branch
          %304 = sbr.rel (%p302) target = $region20
        $region19: #{tpu_custom_call.1} parent=11 // pred_region
          _
        $region20: #{tpu_custom_call.1} parent=11 // pred_fallthru
          _
        // Predicated region
        $region21: #{tpu_custom_call.1} parent=11 // pred_check
          %p305 = pneg %p169
        $region22: #{tpu_custom_call.1} parent=11 // pred_check_branch
          %307 = sbr.rel (%p305) target = $region24
        $region23: #{tpu_custom_call.1} parent=11 // pred_region
          _
        $region24: #{tpu_custom_call.1} parent=11 // pred_fallthru
          _
        // Predicated region
        $region25: #{tpu_custom_call.1} parent=11 // pred_check
          %p308 = pneg %p190
        $region26: #{tpu_custom_call.1} parent=11 // pred_check_branch
          %310 = sbr.rel (%p308) target = $region28
        $region27: #{tpu_custom_call.1} parent=11 // pred_region
          _
        $region28: #{tpu_custom_call.1} parent=11 // pred_fallthru
          _
        // Predicated region
        $region29: #{tpu_custom_call.1} parent=11 // pred_check
          %p311 = pneg %p211
        $region30: #{tpu_custom_call.1} parent=11 // pred_check_branch
          %313 = sbr.rel (%p311) target = $region32
        $region31: #{tpu_custom_call.1} parent=11 // pred_region
          _
        $region32: #{tpu_custom_call.1} parent=11 // pred_fallthru
          _
        // Predicated region
        $region33: #{tpu_custom_call.1} parent=11 // pred_check
          %p314 = pneg %p232
        $region34: #{tpu_custom_call.1} parent=11 // pred_check_branch
          %316 = sbr.rel (%p314) target = $region36
        $region35: #{tpu_custom_call.1} parent=11 // pred_region
          _
        $region36: #{tpu_custom_call.1} parent=11 // pred_fallthru
          _
      $region12: #{tpu_custom_call.1} parent=5 // pred_fallthru
        _
      %p317 = scmp.lt.s32.totalorder %s26, 8
      // Predicated region
      $region37: #{tpu_custom_call.1} parent=5 // pred_check
        %p318 = pneg %p317
      $region38: #{tpu_custom_call.1} parent=5 // pred_check_branch
        %320 = sbr.rel (%p318) target = $region40
      $region39: #{tpu_custom_call.1} parent=5 // pred_region
        // Predicated region
        $region41: #{tpu_custom_call.1} parent=39 // pred_check
          %p321 = pneg %p66
        $region42: #{tpu_custom_call.1} parent=39 // pred_check_branch
          %323 = sbr.rel (%p321) target = $region44
        $region43: #{tpu_custom_call.1} parent=39 // pred_region
          %s324 = smul.u32 %s33, 4
          %s325 = sadd.s32 %s324, %s34
          %p326 = scmp.lt.s32.totalorder %s325, 6
          %s327 = scalar_select %p326, %s325, 6
          %s328 = smul.u32 64, %s327
          %s329 = ssub.s32 432, %s328
          %p330 = scmp.lt.s32.totalorder %s329, 64
          %s331 = scalar_select %p330, %s329, 64
          %s332 = smul.u32 8, %s331
          %p333 = scmp.lt.s32.totalorder %s328, 431
          %s334 = scalar_select %p333, %s328, 431
          %s335 = smul.addr %s334, 8
          %s336 = scalar_lea.vmem %s0, %s335
          %s337 = smul.u32 %s33, 4
          %s338 = sadd.s32 %s337, %s34
          %p339 = scmp.lt.s32.totalorder %s338, 6
          %s340 = scalar_select %p339, %s338, 6
          %s341 = smul.u32 64, %s340
          %s342 = ssub.s32 432, %s341
          %p343 = scmp.lt.s32.totalorder %s342, 64
          %s344 = scalar_select %p343, %s342, 64
          %s345 = smul.u32 8, %s344
        $region44: #{tpu_custom_call.1} parent=39 // pred_fallthru
          _
        // Predicated region
        $region45: #{tpu_custom_call.1} parent=39 // pred_check
          %p346 = pneg %p100
        $region46: #{tpu_custom_call.1} parent=39 // pred_check_branch
          %348 = sbr.rel (%p346) target = $region48
        $region47: #{tpu_custom_call.1} parent=39 // pred_region
          %s349 = smul.u32 %s33, 4
          %s350 = sadd.s32 %s349, %s34
          %p351 = scmp.lt.s32.totalorder %s350, 6
          %s352 = scalar_select %p351, %s350, 6
          %s353 = smul.u32 64, %s352
          %s354 = ssub.s32 432, %s353
          %p355 = scmp.lt.s32.totalorder %s354, 64
          %s356 = scalar_select %p355, %s354, 64
          %s357 = smul.u32 8, %s356
          %p358 = scmp.lt.s32.totalorder %s353, 431
          %s359 = scalar_select %p358, %s353, 431
          %s360 = smul.addr %s359, 8
          %s361 = scalar_lea.vmem %s1, %s360
          %s362 = smul.u32 %s33, 4
          %s363 = sadd.s32 %s362, %s34
          %p364 = scmp.lt.s32.totalorder %s363, 6
          %s365 = scalar_select %p364, %s363, 6
          %s366 = smul.u32 64, %s365
          %s367 = ssub.s32 432, %s366
          %p368 = scmp.lt.s32.totalorder %s367, 64
          %s369 = scalar_select %p368, %s367, 64
          %s370 = smul.u32 8, %s369
        $region48: #{tpu_custom_call.1} parent=39 // pred_fallthru
          _
      $region40: #{tpu_custom_call.1} parent=5 // pred_fallthru
        _
      %p371 = scmp.le.s32.totalorder 1, %s26
      %p372 = scmp.lt.s32.totalorder %s26, 9
      %p373 = pnand %p371, %p372
      %p374 = pneg %p373
      // Predicated region
      $region49: #{tpu_custom_call.1} parent=5 // pred_check
        _
      $region50: #{tpu_custom_call.1} parent=5 // pred_check_branch
        %376 = sbr.rel (%p373) target = $region52
      $region51: #{tpu_custom_call.1} parent=5 // pred_region
        %s377 = ssub.s32 %s26, 1
        %s378 = smul.u32 %s35, 4
        %s379 = sadd.s32 %s378, %s36
        %p380 = scmp.lt.s32.totalorder %s379, 6
        %s381 = scalar_select %p380, %s379, 6
        %s382 = smul.u32 64, %s381
        %s383 = ssub.s32 432, %s382
        %p384 = scmp.lt.s32.totalorder %s383, 64
        %s385 = scalar_select %p384, %s383, 64
        %s386 = smul.u32 8, %s385
        %p387 = scmp.lt.s32.totalorder %s382, 431
        %s388 = scalar_select %p387, %s382, 431
        %s389 = smul.addr %s388, 8
        %s390 = scalar_lea.vmem %s0, %s389
        %p391 = pneg %p72
        %p392 = pneg %p69
        %s393 = smul.u32 %s35, 4
        %s394 = sadd.s32 %s393, %s36
        %p395 = scmp.lt.s32.totalorder %s394, 6
        %s396 = scalar_select %p395, %s394, 6
        %s397 = smul.u32 64, %s396
        %s398 = ssub.s32 432, %s397
        %p399 = scmp.lt.s32.totalorder %s398, 64
        %s400 = scalar_select %p399, %s398, 64
        %s401 = smul.u32 8, %s400
        %p402 = scmp.lt.s32.totalorder %s397, 431
        %s403 = scalar_select %p402, %s397, 431
        %s404 = smul.addr %s403, 8
        %s405 = scalar_lea.vmem %s1, %s404
        %p406 = pneg %p106
        %p407 = pneg %p103
        %p408 = pneg %p127
        %p409 = pneg %p124
        %p410 = pneg %p148
        %p411 = pneg %p145
        %p412 = pneg %p169
        %p413 = pneg %p166
        %p414 = pneg %p190
        %p415 = pneg %p187
        %p416 = pneg %p211
        %p417 = pneg %p208
        %p418 = pneg %p232
        %p419 = pneg %p229
        %p420 = pneg %p258
        %p421 = pneg %p255
        %s422 = sand.u32 %s245, 1
        %s423 = scalar_lea.sflag [#allocation7], %s422
        %s424 = sand.u32 %s245, 1
        %s425 = smul.addr %s424, 8
        %s426 = scalar_lea.vmem [#allocation6], %s425
        %p427 = pneg %p284
        %p428 = pneg %p281
        %s429 = sand.u32 %s271, 1
        %s430 = scalar_lea.sflag [#allocation9], %s429
        %s431 = sand.u32 %s271, 1
        %s432 = smul.addr %s431, 8
        %s433 = scalar_lea.vmem [#allocation8], %s432
        %s434 = smul.u32 %s35, 4
        %s435 = sadd.s32 %s434, %s36
        %p436 = scmp.lt.s32.totalorder %s435, 6
        %s437 = scalar_select %p436, %s435, 6
        %s438 = smul.u32 64, %s437
        %s439 = ssub.s32 432, %s438
        %p440 = scmp.lt.s32.totalorder %s439, 64
        %s441 = scalar_select %p440, %s439, 64
        %s442 = smul.u32 8, %s441
        %p443 = scmp.lt.s32.totalorder %s438, 431
        %s444 = scalar_select %p443, %s438, 431
        %s445 = smul.addr %s444, 8
        %s446 = scalar_lea.vmem %s0, %s445
        %s447 = smul.u32 %s35, 4
        %s448 = sadd.s32 %s447, %s36
        %p449 = scmp.lt.s32.totalorder %s448, 6
        %s450 = scalar_select %p449, %s448, 6
        %s451 = smul.u32 64, %s450
        %s452 = ssub.s32 432, %s451
        %p453 = scmp.lt.s32.totalorder %s452, 64
        %s454 = scalar_select %p453, %s452, 64
        %s455 = smul.u32 8, %s454
        %s456 = smul.u32 %s35, 4
        %s457 = sadd.s32 %s456, %s36
        %p458 = scmp.lt.s32.totalorder %s457, 6
        %s459 = scalar_select %p458, %s457, 6
        %s460 = smul.u32 64, %s459
        %s461 = ssub.s32 432, %s460
        %p462 = scmp.lt.s32.totalorder %s461, 64
        %s463 = scalar_select %p462, %s461, 64
        %s464 = smul.u32 8, %s463
        %p465 = scmp.lt.s32.totalorder %s460, 431
        %s466 = scalar_select %p465, %s460, 431
        %s467 = smul.addr %s466, 8
        %s468 = scalar_lea.vmem %s1, %s467
        %s469 = smul.u32 %s35, 4
        %s470 = sadd.s32 %s469, %s36
        %p471 = scmp.lt.s32.totalorder %s470, 6
        %s472 = scalar_select %p471, %s470, 6
        %s473 = smul.u32 64, %s472
        %s474 = ssub.s32 432, %s473
        %p475 = scmp.lt.s32.totalorder %s474, 64
        %s476 = scalar_select %p475, %s474, 64
        %s477 = smul.u32 8, %s476
        %p478 = scmp.eq.s32.totalorder %s36, 0
        // Predicated region
        $region53: #{tpu_custom_call.1} parent=51 // pred_check
          %p479 = pneg %p478
        $region54: #{tpu_custom_call.1} parent=51 // pred_check_branch
          %481 = sbr.rel (%p479) target = $region56
        $region55: #{tpu_custom_call.1} parent=51 // pred_region
          %vm482 = vcmask 516096
          %483 = vst.msk [vmem:[#allocation2] sm:$0x1] %vm482, 0.0
          %vm484 = vcmask 0
          %485 = vst.msk [vmem:[#allocation3] sm:$0x1] %vm484, 0.0
        $region56: #{tpu_custom_call.1} parent=51 // pred_fallthru
          _
        %v486 = vld [vmem:[%s446] sm:$0xff]
        %v487 = vld [vmem:[%s446 + $0x8] sm:$0xff]
        %v488 = vld [vmem:[%s446 + $0x10] sm:$0xff]
        %v489 = vld [vmem:[%s446 + $0x18] sm:$0xff]
        %v490 = vld [vmem:[%s446 + $0x20] sm:$0xff]
        %v491 = vld [vmem:[%s446 + $0x28] sm:$0xff]
        %v492 = vld [vmem:[%s446 + $0x30] sm:$0xff]
        %v493 = vld [vmem:[%s446 + $0x38] sm:$0xff]
        %v494 = vld [vmem:[%s446 + $0x40] sm:$0xff]
        %v495 = vld [vmem:[%s446 + $0x48] sm:$0xff]
        %v496 = vld [vmem:[%s446 + $0x50] sm:$0xff]
        %v497 = vld [vmem:[%s446 + $0x58] sm:$0xff]
        %v498 = vld [vmem:[%s446 + $0x60] sm:$0xff]
        %v499 = vld [vmem:[%s446 + $0x68] sm:$0xff]
        %v500 = vld [vmem:[%s446 + $0x70] sm:$0xff]
        %v501 = vld [vmem:[%s446 + $0x78] sm:$0xff]
        %v502 = vld [vmem:[%s446 + $0x80] sm:$0xff]
        %v503 = vld [vmem:[%s446 + $0x88] sm:$0xff]
        %v504 = vld [vmem:[%s446 + $0x90] sm:$0xff]
        %v505 = vld [vmem:[%s446 + $0x98] sm:$0xff]
        %v506 = vld [vmem:[%s446 + $0xa0] sm:$0xff]
        %v507 = vld [vmem:[%s446 + $0xa8] sm:$0xff]
        %v508 = vld [vmem:[%s446 + $0xb0] sm:$0xff]
        %v509 = vld [vmem:[%s446 + $0xb8] sm:$0xff]
        %v510 = vld [vmem:[%s446 + $0xc0] sm:$0xff]
        %v511 = vld [vmem:[%s446 + $0xc8] sm:$0xff]
        %v512 = vld [vmem:[%s446 + $0xd0] sm:$0xff]
        %v513 = vld [vmem:[%s446 + $0xd8] sm:$0xff]
        %v514 = vld [vmem:[%s446 + $0xe0] sm:$0xff]
        %v515 = vld [vmem:[%s446 + $0xe8] sm:$0xff]
        %v516 = vld [vmem:[%s446 + $0xf0] sm:$0xff]
        %v517 = vld [vmem:[%s446 + $0xf8] sm:$0xff]
        %v518 = vld [vmem:[%s446 + $0x100] sm:$0xff]
        %v519 = vld [vmem:[%s446 + $0x108] sm:$0xff]
        %v520 = vld [vmem:[%s446 + $0x110] sm:$0xff]
        %v521 = vld [vmem:[%s446 + $0x118] sm:$0xff]
        %v522 = vld [vmem:[%s446 + $0x120] sm:$0xff]
        %v523 = vld [vmem:[%s446 + $0x128] sm:$0xff]
        %v524 = vld [vmem:[%s446 + $0x130] sm:$0xff]
        %v525 = vld [vmem:[%s446 + $0x138] sm:$0xff]
        %v526 = vld [vmem:[%s446 + $0x140] sm:$0xff]
        %v527 = vld [vmem:[%s446 + $0x148] sm:$0xff]
        %v528 = vld [vmem:[%s446 + $0x150] sm:$0xff]
        %v529 = vld [vmem:[%s446 + $0x158] sm:$0xff]
        %v530 = vld [vmem:[%s446 + $0x160] sm:$0xff]
        %v531 = vld [vmem:[%s446 + $0x168] sm:$0xff]
        %v532 = vld [vmem:[%s446 + $0x170] sm:$0xff]
        %v533 = vld [vmem:[%s446 + $0x178] sm:$0xff]
        %v534 = vld [vmem:[%s446 + $0x180] sm:$0xff]
        %v535 = vld [vmem:[%s446 + $0x188] sm:$0xff]
        %v536 = vld [vmem:[%s446 + $0x190] sm:$0xff]
        %v537 = vld [vmem:[%s446 + $0x198] sm:$0xff]
        %v538 = vld [vmem:[%s446 + $0x1a0] sm:$0xff]
        %v539 = vld [vmem:[%s446 + $0x1a8] sm:$0xff]
        %v540 = vld [vmem:[%s446 + $0x1b0] sm:$0xff]
        %v541 = vld [vmem:[%s446 + $0x1b8] sm:$0xff]
        %v542 = vld [vmem:[%s446 + $0x1c0] sm:$0xff]
        %v543 = vld [vmem:[%s446 + $0x1c8] sm:$0xff]
        %v544 = vld [vmem:[%s446 + $0x1d0] sm:$0xff]
        %v545 = vld [vmem:[%s446 + $0x1d8] sm:$0xff]
        %v546 = vld [vmem:[%s446 + $0x1e0] sm:$0xff]
        %v547 = vld [vmem:[%s446 + $0x1e8] sm:$0xff]
        %v548 = vld [vmem:[%s446 + $0x1f0] sm:$0xff]
        %v549 = vld [vmem:[%s446 + $0x1f8] sm:$0xff]
        %v550 = vld [vmem:[%s4] sm:$0x1]
        %v552 = vperm.slane %v550, 0
        %v554 = vmul.f32 %v486, %v552
        %v555 = vmul.f32 %v487, %v552
        %v556 = vmul.f32 %v488, %v552
        %v557 = vmul.f32 %v489, %v552
        %v558 = vmul.f32 %v490, %v552
        %v559 = vmul.f32 %v491, %v552
        %v560 = vmul.f32 %v492, %v552
        %v561 = vmul.f32 %v493, %v552
        %v562 = vmul.f32 %v494, %v552
        %v563 = vmul.f32 %v495, %v552
        %v564 = vmul.f32 %v496, %v552
        %v565 = vmul.f32 %v497, %v552
        %v566 = vmul.f32 %v498, %v552
        %v567 = vmul.f32 %v499, %v552
        %v568 = vmul.f32 %v500, %v552
        %v569 = vmul.f32 %v501, %v552
        %v570 = vmul.f32 %v502, %v552
        %v571 = vmul.f32 %v503, %v552
        %v572 = vmul.f32 %v504, %v552
        %v573 = vmul.f32 %v505, %v552
        %v574 = vmul.f32 %v506, %v552
        %v575 = vmul.f32 %v507, %v552
        %v576 = vmul.f32 %v508, %v552
        %v577 = vmul.f32 %v509, %v552
        %v578 = vmul.f32 %v510, %v552
        %v579 = vmul.f32 %v511, %v552
        %v580 = vmul.f32 %v512, %v552
        %v581 = vmul.f32 %v513, %v552
        %v582 = vmul.f32 %v514, %v552
        %v583 = vmul.f32 %v515, %v552
        %v584 = vmul.f32 %v516, %v552
        %v585 = vmul.f32 %v517, %v552
        %v586 = vmul.f32 %v518, %v552
        %v587 = vmul.f32 %v519, %v552
        %v588 = vmul.f32 %v520, %v552
        %v589 = vmul.f32 %v521, %v552
        %v590 = vmul.f32 %v522, %v552
        %v591 = vmul.f32 %v523, %v552
        %v592 = vmul.f32 %v524, %v552
        %v593 = vmul.f32 %v525, %v552
        %v594 = vmul.f32 %v526, %v552
        %v595 = vmul.f32 %v527, %v552
        %v596 = vmul.f32 %v528, %v552
        %v597 = vmul.f32 %v529, %v552
        %v598 = vmul.f32 %v530, %v552
        %v599 = vmul.f32 %v531, %v552
        %v600 = vmul.f32 %v532, %v552
        %v601 = vmul.f32 %v533, %v552
        %v602 = vmul.f32 %v534, %v552
        %v603 = vmul.f32 %v535, %v552
        %v604 = vmul.f32 %v536, %v552
        %v605 = vmul.f32 %v537, %v552
        %v606 = vmul.f32 %v538, %v552
        %v607 = vmul.f32 %v539, %v552
        %v608 = vmul.f32 %v540, %v552
        %v609 = vmul.f32 %v541, %v552
        %v610 = vmul.f32 %v542, %v552
        %v611 = vmul.f32 %v543, %v552
        %v612 = vmul.f32 %v544, %v552
        %v613 = vmul.f32 %v545, %v552
        %v614 = vmul.f32 %v546, %v552
        %v615 = vmul.f32 %v547, %v552
        %v616 = vmul.f32 %v548, %v552
        %v617 = vmul.f32 %v549, %v552
        %v618 = vld [vmem:[%s5] sm:$0x1]
        %v620 = vperm.slane %v618, 0
        %v622 = vadd.f32 %v554, %v620
        %v623 = vadd.f32 %v555, %v620
        %v624 = vadd.f32 %v556, %v620
        %v625 = vadd.f32 %v557, %v620
        %v626 = vadd.f32 %v558, %v620
        %v627 = vadd.f32 %v559, %v620
        %v628 = vadd.f32 %v560, %v620
        %v629 = vadd.f32 %v561, %v620
        %v630 = vadd.f32 %v562, %v620
        %v631 = vadd.f32 %v563, %v620
        %v632 = vadd.f32 %v564, %v620
        %v633 = vadd.f32 %v565, %v620
        %v634 = vadd.f32 %v566, %v620
        %v635 = vadd.f32 %v567, %v620
        %v636 = vadd.f32 %v568, %v620
        %v637 = vadd.f32 %v569, %v620
        %v638 = vadd.f32 %v570, %v620
        %v639 = vadd.f32 %v571, %v620
        %v640 = vadd.f32 %v572, %v620
        %v641 = vadd.f32 %v573, %v620
        %v642 = vadd.f32 %v574, %v620
        %v643 = vadd.f32 %v575, %v620
        %v644 = vadd.f32 %v576, %v620
        %v645 = vadd.f32 %v577, %v620
        %v646 = vadd.f32 %v578, %v620
        %v647 = vadd.f32 %v579, %v620
        %v648 = vadd.f32 %v580, %v620
        %v649 = vadd.f32 %v581, %v620
        %v650 = vadd.f32 %v582, %v620
        %v651 = vadd.f32 %v583, %v620
        %v652 = vadd.f32 %v584, %v620
        %v653 = vadd.f32 %v585, %v620
        %v654 = vadd.f32 %v586, %v620
        %v655 = vadd.f32 %v587, %v620
        %v656 = vadd.f32 %v588, %v620
        %v657 = vadd.f32 %v589, %v620
        %v658 = vadd.f32 %v590, %v620
        %v659 = vadd.f32 %v591, %v620
        %v660 = vadd.f32 %v592, %v620
        %v661 = vadd.f32 %v593, %v620
        %v662 = vadd.f32 %v594, %v620
        %v663 = vadd.f32 %v595, %v620
        %v664 = vadd.f32 %v596, %v620
        %v665 = vadd.f32 %v597, %v620
        %v666 = vadd.f32 %v598, %v620
        %v667 = vadd.f32 %v599, %v620
        %v668 = vadd.f32 %v600, %v620
        %v669 = vadd.f32 %v601, %v620
        %v670 = vadd.f32 %v602, %v620
        %v671 = vadd.f32 %v603, %v620
        %v672 = vadd.f32 %v604, %v620
        %v673 = vadd.f32 %v605, %v620
        %v674 = vadd.f32 %v606, %v620
        %v675 = vadd.f32 %v607, %v620
        %v676 = vadd.f32 %v608, %v620
        %v677 = vadd.f32 %v609, %v620
        %v678 = vadd.f32 %v610, %v620
        %v679 = vadd.f32 %v611, %v620
        %v680 = vadd.f32 %v612, %v620
        %v681 = vadd.f32 %v613, %v620
        %v682 = vadd.f32 %v614, %v620
        %v683 = vadd.f32 %v615, %v620
        %v684 = vadd.f32 %v616, %v620
        %v685 = vadd.f32 %v617, %v620
        %v686 = vld [vmem:[#allocation4] sm:$0x1]
        %v688 = vperm.slane %v686, 0
        %689 = vrot.lane.b32.xlu0 %v688, 15
        %v690 = vpop.permute.xlu0 %689
        %v692 = vmul.f32 %v486, %v690
        %v693 = vmul.f32 %v487, %v690
        %v694 = vmul.f32 %v488, %v690
        %v695 = vmul.f32 %v489, %v690
        %v696 = vmul.f32 %v490, %v690
        %v697 = vmul.f32 %v491, %v690
        %v698 = vmul.f32 %v492, %v690
        %v699 = vmul.f32 %v493, %v690
        %v700 = vmul.f32 %v494, %v690
        %v701 = vmul.f32 %v495, %v690
        %v702 = vmul.f32 %v496, %v690
        %v703 = vmul.f32 %v497, %v690
        %v704 = vmul.f32 %v498, %v690
        %v705 = vmul.f32 %v499, %v690
        %v706 = vmul.f32 %v500, %v690
        %v707 = vmul.f32 %v501, %v690
        %v708 = vmul.f32 %v502, %v690
        %v709 = vmul.f32 %v503, %v690
        %v710 = vmul.f32 %v504, %v690
        %v711 = vmul.f32 %v505, %v690
        %v712 = vmul.f32 %v506, %v690
        %v713 = vmul.f32 %v507, %v690
        %v714 = vmul.f32 %v508, %v690
        %v715 = vmul.f32 %v509, %v690
        %v716 = vmul.f32 %v510, %v690
        %v717 = vmul.f32 %v511, %v690
        %v718 = vmul.f32 %v512, %v690
        %v719 = vmul.f32 %v513, %v690
        %v720 = vmul.f32 %v514, %v690
        %v721 = vmul.f32 %v515, %v690
        %v722 = vmul.f32 %v516, %v690
        %v723 = vmul.f32 %v517, %v690
        %v724 = vmul.f32 %v518, %v690
        %v725 = vmul.f32 %v519, %v690
        %v726 = vmul.f32 %v520, %v690
        %v727 = vmul.f32 %v521, %v690
        %v728 = vmul.f32 %v522, %v690
        %v729 = vmul.f32 %v523, %v690
        %v730 = vmul.f32 %v524, %v690
        %v731 = vmul.f32 %v525, %v690
        %v732 = vmul.f32 %v526, %v690
        %v733 = vmul.f32 %v527, %v690
        %v734 = vmul.f32 %v528, %v690
        %v735 = vmul.f32 %v529, %v690
        %v736 = vmul.f32 %v530, %v690
        %v737 = vmul.f32 %v531, %v690
        %v738 = vmul.f32 %v532, %v690
        %v739 = vmul.f32 %v533, %v690
        %v740 = vmul.f32 %v534, %v690
        %v741 = vmul.f32 %v535, %v690
        %v742 = vmul.f32 %v536, %v690
        %v743 = vmul.f32 %v537, %v690
        %v744 = vmul.f32 %v538, %v690
        %v745 = vmul.f32 %v539, %v690
        %v746 = vmul.f32 %v540, %v690
        %v747 = vmul.f32 %v541, %v690
        %v748 = vmul.f32 %v542, %v690
        %v749 = vmul.f32 %v543, %v690
        %v750 = vmul.f32 %v544, %v690
        %v751 = vmul.f32 %v545, %v690
        %v752 = vmul.f32 %v546, %v690
        %v753 = vmul.f32 %v547, %v690
        %v754 = vmul.f32 %v548, %v690
        %v755 = vmul.f32 %v549, %v690
        %v756 = vld [vmem:[#allocation5] sm:$0x1]
        %v758 = vperm.slane %v756, 0
        %759 = vrot.lane.b32.xlu0 %v758, 15
        %v760 = vpop.permute.xlu0 %759
        %v762 = vadd.f32 %v692, %v760
        %v763 = vadd.f32 %v693, %v760
        %v764 = vadd.f32 %v694, %v760
        %v765 = vadd.f32 %v695, %v760
        %v766 = vadd.f32 %v696, %v760
        %v767 = vadd.f32 %v697, %v760
        %v768 = vadd.f32 %v698, %v760
        %v769 = vadd.f32 %v699, %v760
        %v770 = vadd.f32 %v700, %v760
        %v771 = vadd.f32 %v701, %v760
        %v772 = vadd.f32 %v702, %v760
        %v773 = vadd.f32 %v703, %v760
        %v774 = vadd.f32 %v704, %v760
        %v775 = vadd.f32 %v705, %v760
        %v776 = vadd.f32 %v706, %v760
        %v777 = vadd.f32 %v707, %v760
        %v778 = vadd.f32 %v708, %v760
        %v779 = vadd.f32 %v709, %v760
        %v780 = vadd.f32 %v710, %v760
        %v781 = vadd.f32 %v711, %v760
        %v782 = vadd.f32 %v712, %v760
        %v783 = vadd.f32 %v713, %v760
        %v784 = vadd.f32 %v714, %v760
        %v785 = vadd.f32 %v715, %v760
        %v786 = vadd.f32 %v716, %v760
        %v787 = vadd.f32 %v717, %v760
        %v788 = vadd.f32 %v718, %v760
        %v789 = vadd.f32 %v719, %v760
        %v790 = vadd.f32 %v720, %v760
        %v791 = vadd.f32 %v721, %v760
        %v792 = vadd.f32 %v722, %v760
        %v793 = vadd.f32 %v723, %v760
        %v794 = vadd.f32 %v724, %v760
        %v795 = vadd.f32 %v725, %v760
        %v796 = vadd.f32 %v726, %v760
        %v797 = vadd.f32 %v727, %v760
        %v798 = vadd.f32 %v728, %v760
        %v799 = vadd.f32 %v729, %v760
        %v800 = vadd.f32 %v730, %v760
        %v801 = vadd.f32 %v731, %v760
        %v802 = vadd.f32 %v732, %v760
        %v803 = vadd.f32 %v733, %v760
        %v804 = vadd.f32 %v734, %v760
        %v805 = vadd.f32 %v735, %v760
        %v806 = vadd.f32 %v736, %v760
        %v807 = vadd.f32 %v737, %v760
        %v808 = vadd.f32 %v738, %v760
        %v809 = vadd.f32 %v739, %v760
        %v810 = vadd.f32 %v740, %v760
        %v811 = vadd.f32 %v741, %v760
        %v812 = vadd.f32 %v742, %v760
        %v813 = vadd.f32 %v743, %v760
        %v814 = vadd.f32 %v744, %v760
        %v815 = vadd.f32 %v745, %v760
        %v816 = vadd.f32 %v746, %v760
        %v817 = vadd.f32 %v747, %v760
        %v818 = vadd.f32 %v748, %v760
        %v819 = vadd.f32 %v749, %v760
        %v820 = vadd.f32 %v750, %v760
        %v821 = vadd.f32 %v751, %v760
        %v822 = vadd.f32 %v752, %v760
        %v823 = vadd.f32 %v753, %v760
        %v824 = vadd.f32 %v754, %v760
        %v825 = vadd.f32 %v755, %v760
        %827 = vset.pattern.permute.xlu0 15
        %828 = vperm.xlu0 %827, %v762
        %v829 = vpop.permute.xlu0 %828
        %832 = vset.pattern.permute.xlu0 15
        %833 = vperm.xlu0 %832, %v763
        %v834 = vpop.permute.xlu0 %833
        %837 = vset.pattern.permute.xlu0 15
        %838 = vperm.xlu0 %837, %v764
        %v839 = vpop.permute.xlu0 %838
        %842 = vset.pattern.permute.xlu0 15
        %843 = vperm.xlu0 %842, %v765
        %v844 = vpop.permute.xlu0 %843
        %847 = vset.pattern.permute.xlu0 15
        %848 = vperm.xlu0 %847, %v766
        %v849 = vpop.permute.xlu0 %848
        %852 = vset.pattern.permute.xlu0 15
        %853 = vperm.xlu0 %852, %v767
        %v854 = vpop.permute.xlu0 %853
        %857 = vset.pattern.permute.xlu0 15
        %858 = vperm.xlu0 %857, %v768
        %v859 = vpop.permute.xlu0 %858
        %862 = vset.pattern.permute.xlu0 15
        %863 = vperm.xlu0 %862, %v769
        %v864 = vpop.permute.xlu0 %863
        %867 = vset.pattern.permute.xlu0 15
        %868 = vperm.xlu0 %867, %v770
        %v869 = vpop.permute.xlu0 %868
        %872 = vset.pattern.permute.xlu0 15
        %873 = vperm.xlu0 %872, %v771
        %v874 = vpop.permute.xlu0 %873
        %877 = vset.pattern.permute.xlu0 15
        %878 = vperm.xlu0 %877, %v772
        %v879 = vpop.permute.xlu0 %878
        %882 = vset.pattern.permute.xlu0 15
        %883 = vperm.xlu0 %882, %v773
        %v884 = vpop.permute.xlu0 %883
        %887 = vset.pattern.permute.xlu0 15
        %888 = vperm.xlu0 %887, %v774
        %v889 = vpop.permute.xlu0 %888
        %892 = vset.pattern.permute.xlu0 15
        %893 = vperm.xlu0 %892, %v775
        %v894 = vpop.permute.xlu0 %893
        %897 = vset.pattern.permute.xlu0 15
        %898 = vperm.xlu0 %897, %v776
        %v899 = vpop.permute.xlu0 %898
        %902 = vset.pattern.permute.xlu0 15
        %903 = vperm.xlu0 %902, %v777
        %v904 = vpop.permute.xlu0 %903
        %907 = vset.pattern.permute.xlu0 15
        %908 = vperm.xlu0 %907, %v778
        %v909 = vpop.permute.xlu0 %908
        %912 = vset.pattern.permute.xlu0 15
        %913 = vperm.xlu0 %912, %v779
        %v914 = vpop.permute.xlu0 %913
        %917 = vset.pattern.permute.xlu0 15
        %918 = vperm.xlu0 %917, %v780
        %v919 = vpop.permute.xlu0 %918
        %922 = vset.pattern.permute.xlu0 15
        %923 = vperm.xlu0 %922, %v781
        %v924 = vpop.permute.xlu0 %923
        %927 = vset.pattern.permute.xlu0 15
        %928 = vperm.xlu0 %927, %v782
        %v929 = vpop.permute.xlu0 %928
        %932 = vset.pattern.permute.xlu0 15
        %933 = vperm.xlu0 %932, %v783
        %v934 = vpop.permute.xlu0 %933
        %937 = vset.pattern.permute.xlu0 15
        %938 = vperm.xlu0 %937, %v784
        %v939 = vpop.permute.xlu0 %938
        %942 = vset.pattern.permute.xlu0 15
        %943 = vperm.xlu0 %942, %v785
        %v944 = vpop.permute.xlu0 %943
        %947 = vset.pattern.permute.xlu0 15
        %948 = vperm.xlu0 %947, %v786
        %v949 = vpop.permute.xlu0 %948
        %952 = vset.pattern.permute.xlu0 15
        %953 = vperm.xlu0 %952, %v787
        %v954 = vpop.permute.xlu0 %953
        %957 = vset.pattern.permute.xlu0 15
        %958 = vperm.xlu0 %957, %v788
        %v959 = vpop.permute.xlu0 %958
        %962 = vset.pattern.permute.xlu0 15
        %963 = vperm.xlu0 %962, %v789
        %v964 = vpop.permute.xlu0 %963
        %967 = vset.pattern.permute.xlu0 15
        %968 = vperm.xlu0 %967, %v790
        %v969 = vpop.permute.xlu0 %968
        %972 = vset.pattern.permute.xlu0 15
        %973 = vperm.xlu0 %972, %v791
        %v974 = vpop.permute.xlu0 %973
        %977 = vset.pattern.permute.xlu0 15
        %978 = vperm.xlu0 %977, %v792
        %v979 = vpop.permute.xlu0 %978
        %982 = vset.pattern.permute.xlu0 15
        %983 = vperm.xlu0 %982, %v793
        %v984 = vpop.permute.xlu0 %983
        %987 = vset.pattern.permute.xlu0 15
        %988 = vperm.xlu0 %987, %v794
        %v989 = vpop.permute.xlu0 %988
        %992 = vset.pattern.permute.xlu0 15
        %993 = vperm.xlu0 %992, %v795
        %v994 = vpop.permute.xlu0 %993
        %997 = vset.pattern.permute.xlu0 15
        %998 = vperm.xlu0 %997, %v796
        %v999 = vpop.permute.xlu0 %998
        %1002 = vset.pattern.permute.xlu0 15
        %1003 = vperm.xlu0 %1002, %v797
        %v1004 = vpop.permute.xlu0 %1003
        %1007 = vset.pattern.permute.xlu0 15
        %1008 = vperm.xlu0 %1007, %v798
        %v1009 = vpop.permute.xlu0 %1008
        %1012 = vset.pattern.permute.xlu0 15
        %1013 = vperm.xlu0 %1012, %v799
        %v1014 = vpop.permute.xlu0 %1013
        %1017 = vset.pattern.permute.xlu0 15
        %1018 = vperm.xlu0 %1017, %v800
        %v1019 = vpop.permute.xlu0 %1018
        %1022 = vset.pattern.permute.xlu0 15
        %1023 = vperm.xlu0 %1022, %v801
        %v1024 = vpop.permute.xlu0 %1023
        %1027 = vset.pattern.permute.xlu0 15
        %1028 = vperm.xlu0 %1027, %v802
        %v1029 = vpop.permute.xlu0 %1028
        %1032 = vset.pattern.permute.xlu0 15
        %1033 = vperm.xlu0 %1032, %v803
        %v1034 = vpop.permute.xlu0 %1033
        %1037 = vset.pattern.permute.xlu0 15
        %1038 = vperm.xlu0 %1037, %v804
        %v1039 = vpop.permute.xlu0 %1038
        %1042 = vset.pattern.permute.xlu0 15
        %1043 = vperm.xlu0 %1042, %v805
        %v1044 = vpop.permute.xlu0 %1043
        %1047 = vset.pattern.permute.xlu0 15
        %1048 = vperm.xlu0 %1047, %v806
        %v1049 = vpop.permute.xlu0 %1048
        %1052 = vset.pattern.permute.xlu0 15
        %1053 = vperm.xlu0 %1052, %v807
        %v1054 = vpop.permute.xlu0 %1053
        %1057 = vset.pattern.permute.xlu0 15
        %1058 = vperm.xlu0 %1057, %v808
        %v1059 = vpop.permute.xlu0 %1058
        %1062 = vset.pattern.permute.xlu0 15
        %1063 = vperm.xlu0 %1062, %v809
        %v1064 = vpop.permute.xlu0 %1063
        %1067 = vset.pattern.permute.xlu0 15
        %1068 = vperm.xlu0 %1067, %v810
        %v1069 = vpop.permute.xlu0 %1068
        %1072 = vset.pattern.permute.xlu0 15
        %1073 = vperm.xlu0 %1072, %v811
        %v1074 = vpop.permute.xlu0 %1073
        %1077 = vset.pattern.permute.xlu0 15
        %1078 = vperm.xlu0 %1077, %v812
        %v1079 = vpop.permute.xlu0 %1078
        %1082 = vset.pattern.permute.xlu0 15
        %1083 = vperm.xlu0 %1082, %v813
        %v1084 = vpop.permute.xlu0 %1083
        %1087 = vset.pattern.permute.xlu0 15
        %1088 = vperm.xlu0 %1087, %v814
        %v1089 = vpop.permute.xlu0 %1088
        %1092 = vset.pattern.permute.xlu0 15
        %1093 = vperm.xlu0 %1092, %v815
        %v1094 = vpop.permute.xlu0 %1093
        %1097 = vset.pattern.permute.xlu0 15
        %1098 = vperm.xlu0 %1097, %v816
        %v1099 = vpop.permute.xlu0 %1098
        %1102 = vset.pattern.permute.xlu0 15
        %1103 = vperm.xlu0 %1102, %v817
        %v1104 = vpop.permute.xlu0 %1103
        %1107 = vset.pattern.permute.xlu0 15
        %1108 = vperm.xlu0 %1107, %v818
        %v1109 = vpop.permute.xlu0 %1108
        %1112 = vset.pattern.permute.xlu0 15
        %1113 = vperm.xlu0 %1112, %v819
        %v1114 = vpop.permute.xlu0 %1113
        %1117 = vset.pattern.permute.xlu0 15
        %1118 = vperm.xlu0 %1117, %v820
        %v1119 = vpop.permute.xlu0 %1118
        %1122 = vset.pattern.permute.xlu0 15
        %1123 = vperm.xlu0 %1122, %v821
        %v1124 = vpop.permute.xlu0 %1123
        %1127 = vset.pattern.permute.xlu0 15
        %1128 = vperm.xlu0 %1127, %v822
        %v1129 = vpop.permute.xlu0 %1128
        %1132 = vset.pattern.permute.xlu0 15
        %1133 = vperm.xlu0 %1132, %v823
        %v1134 = vpop.permute.xlu0 %1133
        %1137 = vset.pattern.permute.xlu0 15
        %1138 = vperm.xlu0 %1137, %v824
        %v1139 = vpop.permute.xlu0 %1138
        %1142 = vset.pattern.permute.xlu0 15
        %1143 = vperm.xlu0 %1142, %v825
        %v1144 = vpop.permute.xlu0 %1143
        %v1146 = vmul.f32 %v622, %v829
        %v1147 = vmul.f32 %v623, %v834
        %v1148 = vmul.f32 %v624, %v839
        %v1149 = vmul.f32 %v625, %v844
        %v1150 = vmul.f32 %v626, %v849
        %v1151 = vmul.f32 %v627, %v854
        %v1152 = vmul.f32 %v628, %v859
        %v1153 = vmul.f32 %v629, %v864
        %v1154 = vmul.f32 %v630, %v869
        %v1155 = vmul.f32 %v631, %v874
        %v1156 = vmul.f32 %v632, %v879
        %v1157 = vmul.f32 %v633, %v884
        %v1158 = vmul.f32 %v634, %v889
        %v1159 = vmul.f32 %v635, %v894
        %v1160 = vmul.f32 %v636, %v899
        %v1161 = vmul.f32 %v637, %v904
        %v1162 = vmul.f32 %v638, %v909
        %v1163 = vmul.f32 %v639, %v914
        %v1164 = vmul.f32 %v640, %v919
        %v1165 = vmul.f32 %v641, %v924
        %v1166 = vmul.f32 %v642, %v929
        %v1167 = vmul.f32 %v643, %v934
        %v1168 = vmul.f32 %v644, %v939
        %v1169 = vmul.f32 %v645, %v944
        %v1170 = vmul.f32 %v646, %v949
        %v1171 = vmul.f32 %v647, %v954
        %v1172 = vmul.f32 %v648, %v959
        %v1173 = vmul.f32 %v649, %v964
        %v1174 = vmul.f32 %v650, %v969
        %v1175 = vmul.f32 %v651, %v974
        %v1176 = vmul.f32 %v652, %v979
        %v1177 = vmul.f32 %v653, %v984
        %v1178 = vmul.f32 %v654, %v989
        %v1179 = vmul.f32 %v655, %v994
        %v1180 = vmul.f32 %v656, %v999
        %v1181 = vmul.f32 %v657, %v1004
        %v1182 = vmul.f32 %v658, %v1009
        %v1183 = vmul.f32 %v659, %v1014
        %v1184 = vmul.f32 %v660, %v1019
        %v1185 = vmul.f32 %v661, %v1024
        %v1186 = vmul.f32 %v662, %v1029
        %v1187 = vmul.f32 %v663, %v1034
        %v1188 = vmul.f32 %v664, %v1039
        %v1189 = vmul.f32 %v665, %v1044
        %v1190 = vmul.f32 %v666, %v1049
        %v1191 = vmul.f32 %v667, %v1054
        %v1192 = vmul.f32 %v668, %v1059
        %v1193 = vmul.f32 %v669, %v1064
        %v1194 = vmul.f32 %v670, %v1069
        %v1195 = vmul.f32 %v671, %v1074
        %v1196 = vmul.f32 %v672, %v1079
        %v1197 = vmul.f32 %v673, %v1084
        %v1198 = vmul.f32 %v674, %v1089
        %v1199 = vmul.f32 %v675, %v1094
        %v1200 = vmul.f32 %v676, %v1099
        %v1201 = vmul.f32 %v677, %v1104
        %v1202 = vmul.f32 %v678, %v1109
        %v1203 = vmul.f32 %v679, %v1114
        %v1204 = vmul.f32 %v680, %v1119
        %v1205 = vmul.f32 %v681, %v1124
        %v1206 = vmul.f32 %v682, %v1129
        %v1207 = vmul.f32 %v683, %v1134
        %v1208 = vmul.f32 %v684, %v1139
        %v1209 = vmul.f32 %v685, %v1144
        %v1210 = vld [vmem:[%s2] sm:$0xff]
        %v1211 = vld [vmem:[%s2 + $0x8] sm:$0x7f]
        %vm1212 = vcmask 121856
        %v1214 = vsel %vm1212, %v1146, 0
        %v1217 = vsel %vm1212, %v1147, 0
        %v1220 = vsel %vm1212, %v1148, 0
        %v1223 = vsel %vm1212, %v1149, 0
        %v1226 = vsel %vm1212, %v1150, 0
        %v1229 = vsel %vm1212, %v1151, 0
        %v1232 = vsel %vm1212, %v1152, 0
        %v1235 = vsel %vm1212, %v1153, 0
        %v1238 = vsel %vm1212, %v1154, 0
        %v1241 = vsel %vm1212, %v1155, 0
        %v1244 = vsel %vm1212, %v1156, 0
        %v1247 = vsel %vm1212, %v1157, 0
        %v1250 = vsel %vm1212, %v1158, 0
        %v1253 = vsel %vm1212, %v1159, 0
        %v1256 = vsel %vm1212, %v1160, 0
        %v1259 = vsel %vm1212, %v1161, 0
        %v1262 = vsel %vm1212, %v1162, 0
        %v1265 = vsel %vm1212, %v1163, 0
        %v1268 = vsel %vm1212, %v1164, 0
        %v1271 = vsel %vm1212, %v1165, 0
        %v1274 = vsel %vm1212, %v1166, 0
        %v1277 = vsel %vm1212, %v1167, 0
        %v1280 = vsel %vm1212, %v1168, 0
        %v1283 = vsel %vm1212, %v1169, 0
        %v1286 = vsel %vm1212, %v1170, 0
        %v1289 = vsel %vm1212, %v1171, 0
        %v1292 = vsel %vm1212, %v1172, 0
        %v1295 = vsel %vm1212, %v1173, 0
        %v1298 = vsel %vm1212, %v1174, 0
        %v1301 = vsel %vm1212, %v1175, 0
        %v1304 = vsel %vm1212, %v1176, 0
        %v1307 = vsel %vm1212, %v1177, 0
        %v1310 = vsel %vm1212, %v1178, 0
        %v1313 = vsel %vm1212, %v1179, 0
        %v1316 = vsel %vm1212, %v1180, 0
        %v1319 = vsel %vm1212, %v1181, 0
        %v1322 = vsel %vm1212, %v1182, 0
        %v1325 = vsel %vm1212, %v1183, 0
        %v1328 = vsel %vm1212, %v1184, 0
        %v1331 = vsel %vm1212, %v1185, 0
        %v1334 = vsel %vm1212, %v1186, 0
        %v1337 = vsel %vm1212, %v1187, 0
        %v1340 = vsel %vm1212, %v1188, 0
        %v1343 = vsel %vm1212, %v1189, 0
        %v1346 = vsel %vm1212, %v1190, 0
        %v1349 = vsel %vm1212, %v1191, 0
        %v1352 = vsel %vm1212, %v1192, 0
        %v1355 = vsel %vm1212, %v1193, 0
        %v1358 = vsel %vm1212, %v1194, 0
        %v1361 = vsel %vm1212, %v1195, 0
        %v1364 = vsel %vm1212, %v1196, 0
        %v1367 = vsel %vm1212, %v1197, 0
        %v1370 = vsel %vm1212, %v1198, 0
        %v1373 = vsel %vm1212, %v1199, 0
        %v1376 = vsel %vm1212, %v1200, 0
        %v1379 = vsel %vm1212, %v1201, 0
        %v1382 = vsel %vm1212, %v1202, 0
        %v1385 = vsel %vm1212, %v1203, 0
        %v1388 = vsel %vm1212, %v1204, 0
        %v1391 = vsel %vm1212, %v1205, 0
        %v1394 = vsel %vm1212, %v1206, 0
        %v1397 = vsel %vm1212, %v1207, 0
        %v1400 = vsel %vm1212, %v1208, 0
        %v1403 = vsel %vm1212, %v1209, 0
        %vm1405 = vcmask 1046528
        %v1407 = vsel %vm1405, %v1211, 0
        %1409 = vmatpush.msra.mxu0 0.0
        %1410 = vmatpush.msra.mxu0 0.0
        %1411 = vmatpush.msra.mxu0 0.0
        %1412 = vmatpush.msra.mxu0 0.0
        %1413 = vmatpush.msra.mxu0 0.0
        %1414 = vmatpush.msra.mxu0 0.0
        %1415 = vmatpush.msra.mxu0 0.0
        %1416 = vmatpush.msra.mxu0 0.0
        %1417 = vmatpush.msra.mxu0 0.0
        %1418 = vmatpush.msra.mxu0 0.0
        %1419 = vmatpush.msra.mxu0 0.0
        %1420 = vmatpush.msra.mxu0 0.0
        %1421 = vmatpush.msra.mxu0 0.0
        %1422 = vmatpush.msra.mxu0 0.0
        %1423 = vmatpush.msra.mxu0 %v1407
        %1424 = vmatpush.msra.mxu0 %v1210
        %1425 = vmatmul.f32.gmra.mxu0 %v1214
        %v1426 = vpop.f32.mrf.mxu0
        %v1427 = vadd.f32 0.0, %v1426
        %1428 = vmatmul.f32.gmra.mxu0 %v1217
        %v1429 = vpop.f32.mrf.mxu0
        %v1430 = vadd.f32 0.0, %v1429
        %1431 = vmatmul.f32.gmra.mxu0 %v1220
        %v1432 = vpop.f32.mrf.mxu0
        %v1433 = vadd.f32 0.0, %v1432
        %1434 = vmatmul.f32.gmra.mxu0 %v1223
        %v1435 = vpop.f32.mrf.mxu0
        %v1436 = vadd.f32 0.0, %v1435
        %1437 = vmatmul.f32.gmra.mxu0 %v1226
        %v1438 = vpop.f32.mrf.mxu0
        %v1439 = vadd.f32 0.0, %v1438
        %1440 = vmatmul.f32.gmra.mxu0 %v1229
        %v1441 = vpop.f32.mrf.mxu0
        %v1442 = vadd.f32 0.0, %v1441
        %1443 = vmatmul.f32.gmra.mxu0 %v1232
        %v1444 = vpop.f32.mrf.mxu0
        %v1445 = vadd.f32 0.0, %v1444
        %1446 = vmatmul.f32.gmra.mxu0 %v1235
        %v1447 = vpop.f32.mrf.mxu0
        %v1448 = vadd.f32 0.0, %v1447
        %1449 = vmatmul.f32.gmra.mxu0 %v1238
        %v1450 = vpop.f32.mrf.mxu0
        %v1451 = vadd.f32 0.0, %v1450
        %1452 = vmatmul.f32.gmra.mxu0 %v1241
        %v1453 = vpop.f32.mrf.mxu0
        %v1454 = vadd.f32 0.0, %v1453
        %1455 = vmatmul.f32.gmra.mxu0 %v1244
        %v1456 = vpop.f32.mrf.mxu0
        %v1457 = vadd.f32 0.0, %v1456
        %1458 = vmatmul.f32.gmra.mxu0 %v1247
        %v1459 = vpop.f32.mrf.mxu0
        %v1460 = vadd.f32 0.0, %v1459
        %1461 = vmatmul.f32.gmra.mxu0 %v1250
        %v1462 = vpop.f32.mrf.mxu0
        %v1463 = vadd.f32 0.0, %v1462
        %1464 = vmatmul.f32.gmra.mxu0 %v1253
        %v1465 = vpop.f32.mrf.mxu0
        %v1466 = vadd.f32 0.0, %v1465
        %1467 = vmatmul.f32.gmra.mxu0 %v1256
        %v1468 = vpop.f32.mrf.mxu0
        %v1469 = vadd.f32 0.0, %v1468
        %1470 = vmatmul.f32.gmra.mxu0 %v1259
        %v1471 = vpop.f32.mrf.mxu0
        %v1472 = vadd.f32 0.0, %v1471
        %1473 = vmatmul.f32.gmra.mxu0 %v1262
        %v1474 = vpop.f32.mrf.mxu0
        %v1475 = vadd.f32 0.0, %v1474
        %1476 = vmatmul.f32.gmra.mxu0 %v1265
        %v1477 = vpop.f32.mrf.mxu0
        %v1478 = vadd.f32 0.0, %v1477
        %1479 = vmatmul.f32.gmra.mxu0 %v1268
        %v1480 = vpop.f32.mrf.mxu0
        %v1481 = vadd.f32 0.0, %v1480
        %1482 = vmatmul.f32.gmra.mxu0 %v1271
        %v1483 = vpop.f32.mrf.mxu0
        %v1484 = vadd.f32 0.0, %v1483
        %1485 = vmatmul.f32.gmra.mxu0 %v1274
        %v1486 = vpop.f32.mrf.mxu0
        %v1487 = vadd.f32 0.0, %v1486
        %1488 = vmatmul.f32.gmra.mxu0 %v1277
        %v1489 = vpop.f32.mrf.mxu0
        %v1490 = vadd.f32 0.0, %v1489
        %1491 = vmatmul.f32.gmra.mxu0 %v1280
        %v1492 = vpop.f32.mrf.mxu0
        %v1493 = vadd.f32 0.0, %v1492
        %1494 = vmatmul.f32.gmra.mxu0 %v1283
        %v1495 = vpop.f32.mrf.mxu0
        %v1496 = vadd.f32 0.0, %v1495
        %1497 = vmatmul.f32.gmra.mxu0 %v1286
        %v1498 = vpop.f32.mrf.mxu0
        %v1499 = vadd.f32 0.0, %v1498
        %1500 = vmatmul.f32.gmra.mxu0 %v1289
        %v1501 = vpop.f32.mrf.mxu0
        %v1502 = vadd.f32 0.0, %v1501
        %1503 = vmatmul.f32.gmra.mxu0 %v1292
        %v1504 = vpop.f32.mrf.mxu0
        %v1505 = vadd.f32 0.0, %v1504
        %1506 = vmatmul.f32.gmra.mxu0 %v1295
        %v1507 = vpop.f32.mrf.mxu0
        %v1508 = vadd.f32 0.0, %v1507
        %1509 = vmatmul.f32.gmra.mxu0 %v1298
        %v1510 = vpop.f32.mrf.mxu0
        %v1511 = vadd.f32 0.0, %v1510
        %1512 = vmatmul.f32.gmra.mxu0 %v1301
        %v1513 = vpop.f32.mrf.mxu0
        %v1514 = vadd.f32 0.0, %v1513
        %1515 = vmatmul.f32.gmra.mxu0 %v1304
        %v1516 = vpop.f32.mrf.mxu0
        %v1517 = vadd.f32 0.0, %v1516
        %1518 = vmatmul.f32.gmra.mxu0 %v1307
        %v1519 = vpop.f32.mrf.mxu0
        %v1520 = vadd.f32 0.0, %v1519
        %1521 = vmatmul.f32.gmra.mxu0 %v1310
        %v1522 = vpop.f32.mrf.mxu0
        %v1523 = vadd.f32 0.0, %v1522
        %1524 = vmatmul.f32.gmra.mxu0 %v1313
        %v1525 = vpop.f32.mrf.mxu0
        %v1526 = vadd.f32 0.0, %v1525
        %1527 = vmatmul.f32.gmra.mxu0 %v1316
        %v1528 = vpop.f32.mrf.mxu0
        %v1529 = vadd.f32 0.0, %v1528
        %1530 = vmatmul.f32.gmra.mxu0 %v1319
        %v1531 = vpop.f32.mrf.mxu0
        %v1532 = vadd.f32 0.0, %v1531
        %1533 = vmatmul.f32.gmra.mxu0 %v1322
        %v1534 = vpop.f32.mrf.mxu0
        %v1535 = vadd.f32 0.0, %v1534
        %1536 = vmatmul.f32.gmra.mxu0 %v1325
        %v1537 = vpop.f32.mrf.mxu0
        %v1538 = vadd.f32 0.0, %v1537
        %1539 = vmatmul.f32.gmra.mxu0 %v1328
        %v1540 = vpop.f32.mrf.mxu0
        %v1541 = vadd.f32 0.0, %v1540
        %1542 = vmatmul.f32.gmra.mxu0 %v1331
        %v1543 = vpop.f32.mrf.mxu0
        %v1544 = vadd.f32 0.0, %v1543
        %1545 = vmatmul.f32.gmra.mxu0 %v1334
        %v1546 = vpop.f32.mrf.mxu0
        %v1547 = vadd.f32 0.0, %v1546
        %1548 = vmatmul.f32.gmra.mxu0 %v1337
        %v1549 = vpop.f32.mrf.mxu0
        %v1550 = vadd.f32 0.0, %v1549
        %1551 = vmatmul.f32.gmra.mxu0 %v1340
        %v1552 = vpop.f32.mrf.mxu0
        %v1553 = vadd.f32 0.0, %v1552
        %1554 = vmatmul.f32.gmra.mxu0 %v1343
        %v1555 = vpop.f32.mrf.mxu0
        %v1556 = vadd.f32 0.0, %v1555
        %1557 = vmatmul.f32.gmra.mxu0 %v1346
        %v1558 = vpop.f32.mrf.mxu0
        %v1559 = vadd.f32 0.0, %v1558
        %1560 = vmatmul.f32.gmra.mxu0 %v1349
        %v1561 = vpop.f32.mrf.mxu0
        %v1562 = vadd.f32 0.0, %v1561
        %1563 = vmatmul.f32.gmra.mxu0 %v1352
        %v1564 = vpop.f32.mrf.mxu0
        %v1565 = vadd.f32 0.0, %v1564
        %1566 = vmatmul.f32.gmra.mxu0 %v1355
        %v1567 = vpop.f32.mrf.mxu0
        %v1568 = vadd.f32 0.0, %v1567
        %1569 = vmatmul.f32.gmra.mxu0 %v1358
        %v1570 = vpop.f32.mrf.mxu0
        %v1571 = vadd.f32 0.0, %v1570
        %1572 = vmatmul.f32.gmra.mxu0 %v1361
        %v1573 = vpop.f32.mrf.mxu0
        %v1574 = vadd.f32 0.0, %v1573
        %1575 = vmatmul.f32.gmra.mxu0 %v1364
        %v1576 = vpop.f32.mrf.mxu0
        %v1577 = vadd.f32 0.0, %v1576
        %1578 = vmatmul.f32.gmra.mxu0 %v1367
        %v1579 = vpop.f32.mrf.mxu0
        %v1580 = vadd.f32 0.0, %v1579
        %1581 = vmatmul.f32.gmra.mxu0 %v1370
        %v1582 = vpop.f32.mrf.mxu0
        %v1583 = vadd.f32 0.0, %v1582
        %1584 = vmatmul.f32.gmra.mxu0 %v1373
        %v1585 = vpop.f32.mrf.mxu0
        %v1586 = vadd.f32 0.0, %v1585
        %1587 = vmatmul.f32.gmra.mxu0 %v1376
        %v1588 = vpop.f32.mrf.mxu0
        %v1589 = vadd.f32 0.0, %v1588
        %1590 = vmatmul.f32.gmra.mxu0 %v1379
        %v1591 = vpop.f32.mrf.mxu0
        %v1592 = vadd.f32 0.0, %v1591
        %1593 = vmatmul.f32.gmra.mxu0 %v1382
        %v1594 = vpop.f32.mrf.mxu0
        %v1595 = vadd.f32 0.0, %v1594
        %1596 = vmatmul.f32.gmra.mxu0 %v1385
        %v1597 = vpop.f32.mrf.mxu0
        %v1598 = vadd.f32 0.0, %v1597
        %1599 = vmatmul.f32.gmra.mxu0 %v1388
        %v1600 = vpop.f32.mrf.mxu0
        %v1601 = vadd.f32 0.0, %v1600
        %1602 = vmatmul.f32.gmra.mxu0 %v1391
        %v1603 = vpop.f32.mrf.mxu0
        %v1604 = vadd.f32 0.0, %v1603
        %1605 = vmatmul.f32.gmra.mxu0 %v1394
        %v1606 = vpop.f32.mrf.mxu0
        %v1607 = vadd.f32 0.0, %v1606
        %1608 = vmatmul.f32.gmra.mxu0 %v1397
        %v1609 = vpop.f32.mrf.mxu0
        %v1610 = vadd.f32 0.0, %v1609
        %1611 = vmatmul.f32.gmra.mxu0 %v1400
        %v1612 = vpop.f32.mrf.mxu0
        %v1613 = vadd.f32 0.0, %v1612
        %1614 = vmatmul.f32.gmra.mxu0 %v1403
        %v1615 = vpop.f32.mrf.mxu0
        %v1616 = vadd.f32 0.0, %v1615
        %1617 = vdwg.mxu0
        %v1618 = vmax.f32 %v1427, 0.001
        %v1619 = vmax.f32 %v1430, 0.001
        %v1620 = vmax.f32 %v1433, 0.001
        %v1621 = vmax.f32 %v1436, 0.001
        %v1622 = vmax.f32 %v1439, 0.001
        %v1623 = vmax.f32 %v1442, 0.001
        %v1624 = vmax.f32 %v1445, 0.001
        %v1625 = vmax.f32 %v1448, 0.001
        %v1626 = vmax.f32 %v1451, 0.001
        %v1627 = vmax.f32 %v1454, 0.001
        %v1628 = vmax.f32 %v1457, 0.001
        %v1629 = vmax.f32 %v1460, 0.001
        %v1630 = vmax.f32 %v1463, 0.001
        %v1631 = vmax.f32 %v1466, 0.001
        %v1632 = vmax.f32 %v1469, 0.001
        %v1633 = vmax.f32 %v1472, 0.001
        %v1634 = vmax.f32 %v1475, 0.001
        %v1635 = vmax.f32 %v1478, 0.001
        %v1636 = vmax.f32 %v1481, 0.001
        %v1637 = vmax.f32 %v1484, 0.001
        %v1638 = vmax.f32 %v1487, 0.001
        %v1639 = vmax.f32 %v1490, 0.001
        %v1640 = vmax.f32 %v1493, 0.001
        %v1641 = vmax.f32 %v1496, 0.001
        %v1642 = vmax.f32 %v1499, 0.001
        %v1643 = vmax.f32 %v1502, 0.001
        %v1644 = vmax.f32 %v1505, 0.001
        %v1645 = vmax.f32 %v1508, 0.001
        %v1646 = vmax.f32 %v1511, 0.001
        %v1647 = vmax.f32 %v1514, 0.001
        %v1648 = vmax.f32 %v1517, 0.001
        %v1649 = vmax.f32 %v1520, 0.001
        %v1650 = vmax.f32 %v1523, 0.001
        %v1651 = vmax.f32 %v1526, 0.001
        %v1652 = vmax.f32 %v1529, 0.001
        %v1653 = vmax.f32 %v1532, 0.001
        %v1654 = vmax.f32 %v1535, 0.001
        %v1655 = vmax.f32 %v1538, 0.001
        %v1656 = vmax.f32 %v1541, 0.001
        %v1657 = vmax.f32 %v1544, 0.001
        %v1658 = vmax.f32 %v1547, 0.001
        %v1659 = vmax.f32 %v1550, 0.001
        %v1660 = vmax.f32 %v1553, 0.001
        %v1661 = vmax.f32 %v1556, 0.001
        %v1662 = vmax.f32 %v1559, 0.001
        %v1663 = vmax.f32 %v1562, 0.001
        %v1664 = vmax.f32 %v1565, 0.001
        %v1665 = vmax.f32 %v1568, 0.001
        %v1666 = vmax.f32 %v1571, 0.001
        %v1667 = vmax.f32 %v1574, 0.001
        %v1668 = vmax.f32 %v1577, 0.001
        %v1669 = vmax.f32 %v1580, 0.001
        %v1670 = vmax.f32 %v1583, 0.001
        %v1671 = vmax.f32 %v1586, 0.001
        %v1672 = vmax.f32 %v1589, 0.001
        %v1673 = vmax.f32 %v1592, 0.001
        %v1674 = vmax.f32 %v1595, 0.001
        %v1675 = vmax.f32 %v1598, 0.001
        %v1676 = vmax.f32 %v1601, 0.001
        %v1677 = vmax.f32 %v1604, 0.001
        %v1678 = vmax.f32 %v1607, 0.001
        %v1679 = vmax.f32 %v1610, 0.001
        %v1680 = vmax.f32 %v1613, 0.001
        %v1681 = vmax.f32 %v1616, 0.001
        %v1682 = vmin.f32 %v1618, 0.999
        %v1683 = vmin.f32 %v1619, 0.999
        %v1684 = vmin.f32 %v1620, 0.999
        %v1685 = vmin.f32 %v1621, 0.999
        %v1686 = vmin.f32 %v1622, 0.999
        %v1687 = vmin.f32 %v1623, 0.999
        %v1688 = vmin.f32 %v1624, 0.999
        %v1689 = vmin.f32 %v1625, 0.999
        %v1690 = vmin.f32 %v1626, 0.999
        %v1691 = vmin.f32 %v1627, 0.999
        %v1692 = vmin.f32 %v1628, 0.999
        %v1693 = vmin.f32 %v1629, 0.999
        %v1694 = vmin.f32 %v1630, 0.999
        %v1695 = vmin.f32 %v1631, 0.999
        %v1696 = vmin.f32 %v1632, 0.999
        %v1697 = vmin.f32 %v1633, 0.999
        %v1698 = vmin.f32 %v1634, 0.999
        %v1699 = vmin.f32 %v1635, 0.999
        %v1700 = vmin.f32 %v1636, 0.999
        %v1701 = vmin.f32 %v1637, 0.999
        %v1702 = vmin.f32 %v1638, 0.999
        %v1703 = vmin.f32 %v1639, 0.999
        %v1704 = vmin.f32 %v1640, 0.999
        %v1705 = vmin.f32 %v1641, 0.999
        %v1706 = vmin.f32 %v1642, 0.999
        %v1707 = vmin.f32 %v1643, 0.999
        %v1708 = vmin.f32 %v1644, 0.999
        %v1709 = vmin.f32 %v1645, 0.999
        %v1710 = vmin.f32 %v1646, 0.999
        %v1711 = vmin.f32 %v1647, 0.999
        %v1712 = vmin.f32 %v1648, 0.999
        %v1713 = vmin.f32 %v1649, 0.999
        %v1714 = vmin.f32 %v1650, 0.999
        %v1715 = vmin.f32 %v1651, 0.999
        %v1716 = vmin.f32 %v1652, 0.999
        %v1717 = vmin.f32 %v1653, 0.999
        %v1718 = vmin.f32 %v1654, 0.999
        %v1719 = vmin.f32 %v1655, 0.999
        %v1720 = vmin.f32 %v1656, 0.999
        %v1721 = vmin.f32 %v1657, 0.999
        %v1722 = vmin.f32 %v1658, 0.999
        %v1723 = vmin.f32 %v1659, 0.999
        %v1724 = vmin.f32 %v1660, 0.999
        %v1725 = vmin.f32 %v1661, 0.999
        %v1726 = vmin.f32 %v1662, 0.999
        %v1727 = vmin.f32 %v1663, 0.999
        %v1728 = vmin.f32 %v1664, 0.999
        %v1729 = vmin.f32 %v1665, 0.999
        %v1730 = vmin.f32 %v1666, 0.999
        %v1731 = vmin.f32 %v1667, 0.999
        %v1732 = vmin.f32 %v1668, 0.999
        %v1733 = vmin.f32 %v1669, 0.999
        %v1734 = vmin.f32 %v1670, 0.999
        %v1735 = vmin.f32 %v1671, 0.999
        %v1736 = vmin.f32 %v1672, 0.999
        %v1737 = vmin.f32 %v1673, 0.999
        %v1738 = vmin.f32 %v1674, 0.999
        %v1739 = vmin.f32 %v1675, 0.999
        %v1740 = vmin.f32 %v1676, 0.999
        %v1741 = vmin.f32 %v1677, 0.999
        %v1742 = vmin.f32 %v1678, 0.999
        %v1743 = vmin.f32 %v1679, 0.999
        %v1744 = vmin.f32 %v1680, 0.999
        %v1745 = vmin.f32 %v1681, 0.999
        %v1746 = vld [vmem:[%s468] sm:$0xff]
        %v1747 = vld [vmem:[%s468 + $0x8] sm:$0xff]
        %v1748 = vld [vmem:[%s468 + $0x10] sm:$0xff]
        %v1749 = vld [vmem:[%s468 + $0x18] sm:$0xff]
        %v1750 = vld [vmem:[%s468 + $0x20] sm:$0xff]
        %v1751 = vld [vmem:[%s468 + $0x28] sm:$0xff]
        %v1752 = vld [vmem:[%s468 + $0x30] sm:$0xff]
        %v1753 = vld [vmem:[%s468 + $0x38] sm:$0xff]
        %v1754 = vld [vmem:[%s468 + $0x40] sm:$0xff]
        %v1755 = vld [vmem:[%s468 + $0x48] sm:$0xff]
        %v1756 = vld [vmem:[%s468 + $0x50] sm:$0xff]
        %v1757 = vld [vmem:[%s468 + $0x58] sm:$0xff]
        %v1758 = vld [vmem:[%s468 + $0x60] sm:$0xff]
        %v1759 = vld [vmem:[%s468 + $0x68] sm:$0xff]
        %v1760 = vld [vmem:[%s468 + $0x70] sm:$0xff]
        %v1761 = vld [vmem:[%s468 + $0x78] sm:$0xff]
        %v1762 = vld [vmem:[%s468 + $0x80] sm:$0xff]
        %v1763 = vld [vmem:[%s468 + $0x88] sm:$0xff]
        %v1764 = vld [vmem:[%s468 + $0x90] sm:$0xff]
        %v1765 = vld [vmem:[%s468 + $0x98] sm:$0xff]
        %v1766 = vld [vmem:[%s468 + $0xa0] sm:$0xff]
        %v1767 = vld [vmem:[%s468 + $0xa8] sm:$0xff]
        %v1768 = vld [vmem:[%s468 + $0xb0] sm:$0xff]
        %v1769 = vld [vmem:[%s468 + $0xb8] sm:$0xff]
        %v1770 = vld [vmem:[%s468 + $0xc0] sm:$0xff]
        %v1771 = vld [vmem:[%s468 + $0xc8] sm:$0xff]
        %v1772 = vld [vmem:[%s468 + $0xd0] sm:$0xff]
        %v1773 = vld [vmem:[%s468 + $0xd8] sm:$0xff]
        %v1774 = vld [vmem:[%s468 + $0xe0] sm:$0xff]
        %v1775 = vld [vmem:[%s468 + $0xe8] sm:$0xff]
        %v1776 = vld [vmem:[%s468 + $0xf0] sm:$0xff]
        %v1777 = vld [vmem:[%s468 + $0xf8] sm:$0xff]
        %v1778 = vld [vmem:[%s468 + $0x100] sm:$0xff]
        %v1779 = vld [vmem:[%s468 + $0x108] sm:$0xff]
        %v1780 = vld [vmem:[%s468 + $0x110] sm:$0xff]
        %v1781 = vld [vmem:[%s468 + $0x118] sm:$0xff]
        %v1782 = vld [vmem:[%s468 + $0x120] sm:$0xff]
        %v1783 = vld [vmem:[%s468 + $0x128] sm:$0xff]
        %v1784 = vld [vmem:[%s468 + $0x130] sm:$0xff]
        %v1785 = vld [vmem:[%s468 + $0x138] sm:$0xff]
        %v1786 = vld [vmem:[%s468 + $0x140] sm:$0xff]
        %v1787 = vld [vmem:[%s468 + $0x148] sm:$0xff]
        %v1788 = vld [vmem:[%s468 + $0x150] sm:$0xff]
        %v1789 = vld [vmem:[%s468 + $0x158] sm:$0xff]
        %v1790 = vld [vmem:[%s468 + $0x160] sm:$0xff]
        %v1791 = vld [vmem:[%s468 + $0x168] sm:$0xff]
        %v1792 = vld [vmem:[%s468 + $0x170] sm:$0xff]
        %v1793 = vld [vmem:[%s468 + $0x178] sm:$0xff]
        %v1794 = vld [vmem:[%s468 + $0x180] sm:$0xff]
        %v1795 = vld [vmem:[%s468 + $0x188] sm:$0xff]
        %v1796 = vld [vmem:[%s468 + $0x190] sm:$0xff]
        %v1797 = vld [vmem:[%s468 + $0x198] sm:$0xff]
        %v1798 = vld [vmem:[%s468 + $0x1a0] sm:$0xff]
        %v1799 = vld [vmem:[%s468 + $0x1a8] sm:$0xff]
        %v1800 = vld [vmem:[%s468 + $0x1b0] sm:$0xff]
        %v1801 = vld [vmem:[%s468 + $0x1b8] sm:$0xff]
        %v1802 = vld [vmem:[%s468 + $0x1c0] sm:$0xff]
        %v1803 = vld [vmem:[%s468 + $0x1c8] sm:$0xff]
        %v1804 = vld [vmem:[%s468 + $0x1d0] sm:$0xff]
        %v1805 = vld [vmem:[%s468 + $0x1d8] sm:$0xff]
        %v1806 = vld [vmem:[%s468 + $0x1e0] sm:$0xff]
        %v1807 = vld [vmem:[%s468 + $0x1e8] sm:$0xff]
        %v1808 = vld [vmem:[%s468 + $0x1f0] sm:$0xff]
        %v1809 = vld [vmem:[%s468 + $0x1f8] sm:$0xff]
        %v1810 = vsub.f32 %v1682, %v1746
        %v1811 = vsub.f32 %v1683, %v1747
        %v1812 = vsub.f32 %v1684, %v1748
        %v1813 = vsub.f32 %v1685, %v1749
        %v1814 = vsub.f32 %v1686, %v1750
        %v1815 = vsub.f32 %v1687, %v1751
        %v1816 = vsub.f32 %v1688, %v1752
        %v1817 = vsub.f32 %v1689, %v1753
        %v1818 = vsub.f32 %v1690, %v1754
        %v1819 = vsub.f32 %v1691, %v1755
        %v1820 = vsub.f32 %v1692, %v1756
        %v1821 = vsub.f32 %v1693, %v1757
        %v1822 = vsub.f32 %v1694, %v1758
        %v1823 = vsub.f32 %v1695, %v1759
        %v1824 = vsub.f32 %v1696, %v1760
        %v1825 = vsub.f32 %v1697, %v1761
        %v1826 = vsub.f32 %v1698, %v1762
        %v1827 = vsub.f32 %v1699, %v1763
        %v1828 = vsub.f32 %v1700, %v1764
        %v1829 = vsub.f32 %v1701, %v1765
        %v1830 = vsub.f32 %v1702, %v1766
        %v1831 = vsub.f32 %v1703, %v1767
        %v1832 = vsub.f32 %v1704, %v1768
        %v1833 = vsub.f32 %v1705, %v1769
        %v1834 = vsub.f32 %v1706, %v1770
        %v1835 = vsub.f32 %v1707, %v1771
        %v1836 = vsub.f32 %v1708, %v1772
        %v1837 = vsub.f32 %v1709, %v1773
        %v1838 = vsub.f32 %v1710, %v1774
        %v1839 = vsub.f32 %v1711, %v1775
        %v1840 = vsub.f32 %v1712, %v1776
        %v1841 = vsub.f32 %v1713, %v1777
        %v1842 = vsub.f32 %v1714, %v1778
        %v1843 = vsub.f32 %v1715, %v1779
        %v1844 = vsub.f32 %v1716, %v1780
        %v1845 = vsub.f32 %v1717, %v1781
        %v1846 = vsub.f32 %v1718, %v1782
        %v1847 = vsub.f32 %v1719, %v1783
        %v1848 = vsub.f32 %v1720, %v1784
        %v1849 = vsub.f32 %v1721, %v1785
        %v1850 = vsub.f32 %v1722, %v1786
        %v1851 = vsub.f32 %v1723, %v1787
        %v1852 = vsub.f32 %v1724, %v1788
        %v1853 = vsub.f32 %v1725, %v1789
        %v1854 = vsub.f32 %v1726, %v1790
        %v1855 = vsub.f32 %v1727, %v1791
        %v1856 = vsub.f32 %v1728, %v1792
        %v1857 = vsub.f32 %v1729, %v1793
        %v1858 = vsub.f32 %v1730, %v1794
        %v1859 = vsub.f32 %v1731, %v1795
        %v1860 = vsub.f32 %v1732, %v1796
        %v1861 = vsub.f32 %v1733, %v1797
        %v1862 = vsub.f32 %v1734, %v1798
        %v1863 = vsub.f32 %v1735, %v1799
        %v1864 = vsub.f32 %v1736, %v1800
        %v1865 = vsub.f32 %v1737, %v1801
        %v1866 = vsub.f32 %v1738, %v1802
        %v1867 = vsub.f32 %v1739, %v1803
        %v1868 = vsub.f32 %v1740, %v1804
        %v1869 = vsub.f32 %v1741, %v1805
        %v1870 = vsub.f32 %v1742, %v1806
        %v1871 = vsub.f32 %v1743, %v1807
        %v1872 = vsub.f32 %v1744, %v1808
        %v1873 = vsub.f32 %v1745, %v1809
        %s1874 = smul.u32 %s35, 4
        %s1875 = sadd.s32 %s1874, %s36
        %s1876 = smul.u32 %s1875, 512
        %v1877 = vlaneseq
        %v1878 = vshrl.u32 %v1877, 7
        %v1879 = vadd.s32 %v1878, 8
        %v1880 = vadd.s32 %v1878, 16
        %v1881 = vadd.s32 %v1878, 24
        %v1882 = vadd.s32 %v1878, 32
        %v1883 = vadd.s32 %v1878, 40
        %v1884 = vadd.s32 %v1878, 48
        %v1885 = vadd.s32 %v1878, 56
        %v1886 = vadd.s32 %v1878, 64
        %v1887 = vadd.s32 %v1878, 72
        %v1888 = vadd.s32 %v1878, 80
        %v1889 = vadd.s32 %v1878, 88
        %v1890 = vadd.s32 %v1878, 96
        %v1891 = vadd.s32 %v1878, 104
        %v1892 = vadd.s32 %v1878, 112
        %v1893 = vadd.s32 %v1878, 120
        %v1894 = vadd.s32 %v1878, 128
        %v1895 = vadd.s32 %v1878, 136
        %v1896 = vadd.s32 %v1878, 144
        %v1897 = vadd.s32 %v1878, 152
        %v1898 = vadd.s32 %v1878, 160
        %v1899 = vadd.s32 %v1878, 168
        %v1900 = vadd.s32 %v1878, 176
        %v1901 = vadd.s32 %v1878, 184
        %v1902 = vadd.s32 %v1878, 192
        %v1903 = vadd.s32 %v1878, 200
        %v1904 = vadd.s32 %v1878, 208
        %v1905 = vadd.s32 %v1878, 216
        %v1906 = vadd.s32 %v1878, 224
        %v1907 = vadd.s32 %v1878, 232
        %v1908 = vadd.s32 %v1878, 240
        %v1909 = vadd.s32 %v1878, 248
        %v1910 = vadd.s32 %v1878, 256
        %v1911 = vadd.s32 %v1878, 264
        %v1912 = vadd.s32 %v1878, 272
        %v1913 = vadd.s32 %v1878, 280
        %v1914 = vadd.s32 %v1878, 288
        %v1915 = vadd.s32 %v1878, 296
        %v1916 = vadd.s32 %v1878, 304
        %v1917 = vadd.s32 %v1878, 312
        %v1918 = vadd.s32 %v1878, 320
        %v1919 = vadd.s32 %v1878, 328
        %v1920 = vadd.s32 %v1878, 336
        %v1921 = vadd.s32 %v1878, 344
        %v1922 = vadd.s32 %v1878, 352
        %v1923 = vadd.s32 %v1878, 360
        %v1924 = vadd.s32 %v1878, 368
        %v1925 = vadd.s32 %v1878, 376
        %v1926 = vadd.s32 %v1878, 384
        %v1927 = vadd.s32 %v1878, 392
        %v1928 = vadd.s32 %v1878, 400
        %v1929 = vadd.s32 %v1878, 408
        %v1930 = vadd.s32 %v1878, 416
        %v1931 = vadd.s32 %v1878, 424
        %v1932 = vadd.s32 %v1878, 432
        %v1933 = vadd.s32 %v1878, 440
        %v1934 = vadd.s32 %v1878, 448
        %v1935 = vadd.s32 %v1878, 456
        %v1936 = vadd.s32 %v1878, 464
        %v1937 = vadd.s32 %v1878, 472
        %v1938 = vadd.s32 %v1878, 480
        %v1939 = vadd.s32 %v1878, 488
        %v1940 = vadd.s32 %v1878, 496
        %v1941 = vadd.s32 %v1878, 504
        %v1942 = vstv %s1876
        %v1943 = vadd.s32 %v1942, %v1878
        %v1944 = vadd.s32 %v1942, %v1879
        %v1945 = vadd.s32 %v1942, %v1880
        %v1946 = vadd.s32 %v1942, %v1881
        %v1947 = vadd.s32 %v1942, %v1882
        %v1948 = vadd.s32 %v1942, %v1883
        %v1949 = vadd.s32 %v1942, %v1884
        %v1950 = vadd.s32 %v1942, %v1885
        %v1951 = vadd.s32 %v1942, %v1886
        %v1952 = vadd.s32 %v1942, %v1887
        %v1953 = vadd.s32 %v1942, %v1888
        %v1954 = vadd.s32 %v1942, %v1889
        %v1955 = vadd.s32 %v1942, %v1890
        %v1956 = vadd.s32 %v1942, %v1891
        %v1957 = vadd.s32 %v1942, %v1892
        %v1958 = vadd.s32 %v1942, %v1893
        %v1959 = vadd.s32 %v1942, %v1894
        %v1960 = vadd.s32 %v1942, %v1895
        %v1961 = vadd.s32 %v1942, %v1896
        %v1962 = vadd.s32 %v1942, %v1897
        %v1963 = vadd.s32 %v1942, %v1898
        %v1964 = vadd.s32 %v1942, %v1899
        %v1965 = vadd.s32 %v1942, %v1900
        %v1966 = vadd.s32 %v1942, %v1901
        %v1967 = vadd.s32 %v1942, %v1902
        %v1968 = vadd.s32 %v1942, %v1903
        %v1969 = vadd.s32 %v1942, %v1904
        %v1970 = vadd.s32 %v1942, %v1905
        %v1971 = vadd.s32 %v1942, %v1906
        %v1972 = vadd.s32 %v1942, %v1907
        %v1973 = vadd.s32 %v1942, %v1908
        %v1974 = vadd.s32 %v1942, %v1909
        %v1975 = vadd.s32 %v1942, %v1910
        %v1976 = vadd.s32 %v1942, %v1911
        %v1977 = vadd.s32 %v1942, %v1912
        %v1978 = vadd.s32 %v1942, %v1913
        %v1979 = vadd.s32 %v1942, %v1914
        %v1980 = vadd.s32 %v1942, %v1915
        %v1981 = vadd.s32 %v1942, %v1916
        %v1982 = vadd.s32 %v1942, %v1917
        %v1983 = vadd.s32 %v1942, %v1918
        %v1984 = vadd.s32 %v1942, %v1919
        %v1985 = vadd.s32 %v1942, %v1920
        %v1986 = vadd.s32 %v1942, %v1921
        %v1987 = vadd.s32 %v1942, %v1922
        %v1988 = vadd.s32 %v1942, %v1923
        %v1989 = vadd.s32 %v1942, %v1924
        %v1990 = vadd.s32 %v1942, %v1925
        %v1991 = vadd.s32 %v1942, %v1926
        %v1992 = vadd.s32 %v1942, %v1927
        %v1993 = vadd.s32 %v1942, %v1928
        %v1994 = vadd.s32 %v1942, %v1929
        %v1995 = vadd.s32 %v1942, %v1930
        %v1996 = vadd.s32 %v1942, %v1931
        %v1997 = vadd.s32 %v1942, %v1932
        %v1998 = vadd.s32 %v1942, %v1933
        %v1999 = vadd.s32 %v1942, %v1934
        %v2000 = vadd.s32 %v1942, %v1935
        %v2001 = vadd.s32 %v1942, %v1936
        %v2002 = vadd.s32 %v1942, %v1937
        %v2003 = vadd.s32 %v1942, %v1938
        %v2004 = vadd.s32 %v1942, %v1939
        %v2005 = vadd.s32 %v1942, %v1940
        %v2006 = vadd.s32 %v1942, %v1941
        %vm2007 = vcmp.lt.s32.totalorder %v1943, 3456
        %vm2008 = vcmp.lt.s32.totalorder %v1944, 3456
        %vm2009 = vcmp.lt.s32.totalorder %v1945, 3456
        %vm2010 = vcmp.lt.s32.totalorder %v1946, 3456
        %vm2011 = vcmp.lt.s32.totalorder %v1947, 3456
        %vm2012 = vcmp.lt.s32.totalorder %v1948, 3456
        %vm2013 = vcmp.lt.s32.totalorder %v1949, 3456
        %vm2014 = vcmp.lt.s32.totalorder %v1950, 3456
        %vm2015 = vcmp.lt.s32.totalorder %v1951, 3456
        %vm2016 = vcmp.lt.s32.totalorder %v1952, 3456
        %vm2017 = vcmp.lt.s32.totalorder %v1953, 3456
        %vm2018 = vcmp.lt.s32.totalorder %v1954, 3456
        %vm2019 = vcmp.lt.s32.totalorder %v1955, 3456
        %vm2020 = vcmp.lt.s32.totalorder %v1956, 3456
        %vm2021 = vcmp.lt.s32.totalorder %v1957, 3456
        %vm2022 = vcmp.lt.s32.totalorder %v1958, 3456
        %vm2023 = vcmp.lt.s32.totalorder %v1959, 3456
        %vm2024 = vcmp.lt.s32.totalorder %v1960, 3456
        %vm2025 = vcmp.lt.s32.totalorder %v1961, 3456
        %vm2026 = vcmp.lt.s32.totalorder %v1962, 3456
        %vm2027 = vcmp.lt.s32.totalorder %v1963, 3456
        %vm2028 = vcmp.lt.s32.totalorder %v1964, 3456
        %vm2029 = vcmp.lt.s32.totalorder %v1965, 3456
        %vm2030 = vcmp.lt.s32.totalorder %v1966, 3456
        %vm2031 = vcmp.lt.s32.totalorder %v1967, 3456
        %vm2032 = vcmp.lt.s32.totalorder %v1968, 3456
        %vm2033 = vcmp.lt.s32.totalorder %v1969, 3456
        %vm2034 = vcmp.lt.s32.totalorder %v1970, 3456
        %vm2035 = vcmp.lt.s32.totalorder %v1971, 3456
        %vm2036 = vcmp.lt.s32.totalorder %v1972, 3456
        %vm2037 = vcmp.lt.s32.totalorder %v1973, 3456
        %vm2038 = vcmp.lt.s32.totalorder %v1974, 3456
        %vm2039 = vcmp.lt.s32.totalorder %v1975, 3456
        %vm2040 = vcmp.lt.s32.totalorder %v1976, 3456
        %vm2041 = vcmp.lt.s32.totalorder %v1977, 3456
        %vm2042 = vcmp.lt.s32.totalorder %v1978, 3456
        %vm2043 = vcmp.lt.s32.totalorder %v1979, 3456
        %vm2044 = vcmp.lt.s32.totalorder %v1980, 3456
        %vm2045 = vcmp.lt.s32.totalorder %v1981, 3456
        %vm2046 = vcmp.lt.s32.totalorder %v1982, 3456
        %vm2047 = vcmp.lt.s32.totalorder %v1983, 3456
        %vm2048 = vcmp.lt.s32.totalorder %v1984, 3456
        %vm2049 = vcmp.lt.s32.totalorder %v1985, 3456
        %vm2050 = vcmp.lt.s32.totalorder %v1986, 3456
        %vm2051 = vcmp.lt.s32.totalorder %v1987, 3456
        %vm2052 = vcmp.lt.s32.totalorder %v1988, 3456
        %vm2053 = vcmp.lt.s32.totalorder %v1989, 3456
        %vm2054 = vcmp.lt.s32.totalorder %v1990, 3456
        %vm2055 = vcmp.lt.s32.totalorder %v1991, 3456
        %vm2056 = vcmp.lt.s32.totalorder %v1992, 3456
        %vm2057 = vcmp.lt.s32.totalorder %v1993, 3456
        %vm2058 = vcmp.lt.s32.totalorder %v1994, 3456
        %vm2059 = vcmp.lt.s32.totalorder %v1995, 3456
        %vm2060 = vcmp.lt.s32.totalorder %v1996, 3456
        %vm2061 = vcmp.lt.s32.totalorder %v1997, 3456
        %vm2062 = vcmp.lt.s32.totalorder %v1998, 3456
        %vm2063 = vcmp.lt.s32.totalorder %v1999, 3456
        %vm2064 = vcmp.lt.s32.totalorder %v2000, 3456
        %vm2065 = vcmp.lt.s32.totalorder %v2001, 3456
        %vm2066 = vcmp.lt.s32.totalorder %v2002, 3456
        %vm2067 = vcmp.lt.s32.totalorder %v2003, 3456
        %vm2068 = vcmp.lt.s32.totalorder %v2004, 3456
        %vm2069 = vcmp.lt.s32.totalorder %v2005, 3456
        %vm2070 = vcmp.lt.s32.totalorder %v2006, 3456
        %v2071 = vmul.f32 %v1810, %v1810
        %v2072 = vmul.f32 %v1811, %v1811
        %v2073 = vmul.f32 %v1812, %v1812
        %v2074 = vmul.f32 %v1813, %v1813
        %v2075 = vmul.f32 %v1814, %v1814
        %v2076 = vmul.f32 %v1815, %v1815
        %v2077 = vmul.f32 %v1816, %v1816
        %v2078 = vmul.f32 %v1817, %v1817
        %v2079 = vmul.f32 %v1818, %v1818
        %v2080 = vmul.f32 %v1819, %v1819
        %v2081 = vmul.f32 %v1820, %v1820
        %v2082 = vmul.f32 %v1821, %v1821
        %v2083 = vmul.f32 %v1822, %v1822
        %v2084 = vmul.f32 %v1823, %v1823
        %v2085 = vmul.f32 %v1824, %v1824
        %v2086 = vmul.f32 %v1825, %v1825
        %v2087 = vmul.f32 %v1826, %v1826
        %v2088 = vmul.f32 %v1827, %v1827
        %v2089 = vmul.f32 %v1828, %v1828
        %v2090 = vmul.f32 %v1829, %v1829
        %v2091 = vmul.f32 %v1830, %v1830
        %v2092 = vmul.f32 %v1831, %v1831
        %v2093 = vmul.f32 %v1832, %v1832
        %v2094 = vmul.f32 %v1833, %v1833
        %v2095 = vmul.f32 %v1834, %v1834
        %v2096 = vmul.f32 %v1835, %v1835
        %v2097 = vmul.f32 %v1836, %v1836
        %v2098 = vmul.f32 %v1837, %v1837
        %v2099 = vmul.f32 %v1838, %v1838
        %v2100 = vmul.f32 %v1839, %v1839
        %v2101 = vmul.f32 %v1840, %v1840
        %v2102 = vmul.f32 %v1841, %v1841
        %v2103 = vmul.f32 %v1842, %v1842
        %v2104 = vmul.f32 %v1843, %v1843
        %v2105 = vmul.f32 %v1844, %v1844
        %v2106 = vmul.f32 %v1845, %v1845
        %v2107 = vmul.f32 %v1846, %v1846
        %v2108 = vmul.f32 %v1847, %v1847
        %v2109 = vmul.f32 %v1848, %v1848
        %v2110 = vmul.f32 %v1849, %v1849
        %v2111 = vmul.f32 %v1850, %v1850
        %v2112 = vmul.f32 %v1851, %v1851
        %v2113 = vmul.f32 %v1852, %v1852
        %v2114 = vmul.f32 %v1853, %v1853
        %v2115 = vmul.f32 %v1854, %v1854
        %v2116 = vmul.f32 %v1855, %v1855
        %v2117 = vmul.f32 %v1856, %v1856
        %v2118 = vmul.f32 %v1857, %v1857
        %v2119 = vmul.f32 %v1858, %v1858
        %v2120 = vmul.f32 %v1859, %v1859
        %v2121 = vmul.f32 %v1860, %v1860
        %v2122 = vmul.f32 %v1861, %v1861
        %v2123 = vmul.f32 %v1862, %v1862
        %v2124 = vmul.f32 %v1863, %v1863
        %v2125 = vmul.f32 %v1864, %v1864
        %v2126 = vmul.f32 %v1865, %v1865
        %v2127 = vmul.f32 %v1866, %v1866
        %v2128 = vmul.f32 %v1867, %v1867
        %v2129 = vmul.f32 %v1868, %v1868
        %v2130 = vmul.f32 %v1869, %v1869
        %v2131 = vmul.f32 %v1870, %v1870
        %v2132 = vmul.f32 %v1871, %v1871
        %v2133 = vmul.f32 %v1872, %v1872
        %v2134 = vmul.f32 %v1873, %v1873
        %v2135 = vld [vmem:[%s3] sm:$0x1]
        %v2137 = vperm.slane %v2135, 0
        %v2139 = vmul.f32 %v2071, %v2137
        %v2140 = vmul.f32 %v2072, %v2137
        %v2141 = vmul.f32 %v2073, %v2137
        %v2142 = vmul.f32 %v2074, %v2137
        %v2143 = vmul.f32 %v2075, %v2137
        %v2144 = vmul.f32 %v2076, %v2137
        %v2145 = vmul.f32 %v2077, %v2137
        %v2146 = vmul.f32 %v2078, %v2137
        %v2147 = vmul.f32 %v2079, %v2137
        %v2148 = vmul.f32 %v2080, %v2137
        %v2149 = vmul.f32 %v2081, %v2137
        %v2150 = vmul.f32 %v2082, %v2137
        %v2151 = vmul.f32 %v2083, %v2137
        %v2152 = vmul.f32 %v2084, %v2137
        %v2153 = vmul.f32 %v2085, %v2137
        %v2154 = vmul.f32 %v2086, %v2137
        %v2155 = vmul.f32 %v2087, %v2137
        %v2156 = vmul.f32 %v2088, %v2137
        %v2157 = vmul.f32 %v2089, %v2137
        %v2158 = vmul.f32 %v2090, %v2137
        %v2159 = vmul.f32 %v2091, %v2137
        %v2160 = vmul.f32 %v2092, %v2137
        %v2161 = vmul.f32 %v2093, %v2137
        %v2162 = vmul.f32 %v2094, %v2137
        %v2163 = vmul.f32 %v2095, %v2137
        %v2164 = vmul.f32 %v2096, %v2137
        %v2165 = vmul.f32 %v2097, %v2137
        %v2166 = vmul.f32 %v2098, %v2137
        %v2167 = vmul.f32 %v2099, %v2137
        %v2168 = vmul.f32 %v2100, %v2137
        %v2169 = vmul.f32 %v2101, %v2137
        %v2170 = vmul.f32 %v2102, %v2137
        %v2171 = vmul.f32 %v2103, %v2137
        %v2172 = vmul.f32 %v2104, %v2137
        %v2173 = vmul.f32 %v2105, %v2137
        %v2174 = vmul.f32 %v2106, %v2137
        %v2175 = vmul.f32 %v2107, %v2137
        %v2176 = vmul.f32 %v2108, %v2137
        %v2177 = vmul.f32 %v2109, %v2137
        %v2178 = vmul.f32 %v2110, %v2137
        %v2179 = vmul.f32 %v2111, %v2137
        %v2180 = vmul.f32 %v2112, %v2137
        %v2181 = vmul.f32 %v2113, %v2137
        %v2182 = vmul.f32 %v2114, %v2137
        %v2183 = vmul.f32 %v2115, %v2137
        %v2184 = vmul.f32 %v2116, %v2137
        %v2185 = vmul.f32 %v2117, %v2137
        %v2186 = vmul.f32 %v2118, %v2137
        %v2187 = vmul.f32 %v2119, %v2137
        %v2188 = vmul.f32 %v2120, %v2137
        %v2189 = vmul.f32 %v2121, %v2137
        %v2190 = vmul.f32 %v2122, %v2137
        %v2191 = vmul.f32 %v2123, %v2137
        %v2192 = vmul.f32 %v2124, %v2137
        %v2193 = vmul.f32 %v2125, %v2137
        %v2194 = vmul.f32 %v2126, %v2137
        %v2195 = vmul.f32 %v2127, %v2137
        %v2196 = vmul.f32 %v2128, %v2137
        %v2197 = vmul.f32 %v2129, %v2137
        %v2198 = vmul.f32 %v2130, %v2137
        %v2199 = vmul.f32 %v2131, %v2137
        %v2200 = vmul.f32 %v2132, %v2137
        %v2201 = vmul.f32 %v2133, %v2137
        %v2202 = vmul.f32 %v2134, %v2137
        %2204 = vset.pattern.permute.xlu0 16
        %2205 = vperm.xlu0 %2204, %v486
        %v2206 = vpop.permute.xlu0 %2205
        %2209 = vset.pattern.permute.xlu0 16
        %2210 = vperm.xlu0 %2209, %v487
        %v2211 = vpop.permute.xlu0 %2210
        %2214 = vset.pattern.permute.xlu0 16
        %2215 = vperm.xlu0 %2214, %v488
        %v2216 = vpop.permute.xlu0 %2215
        %2219 = vset.pattern.permute.xlu0 16
        %2220 = vperm.xlu0 %2219, %v489
        %v2221 = vpop.permute.xlu0 %2220
        %2224 = vset.pattern.permute.xlu0 16
        %2225 = vperm.xlu0 %2224, %v490
        %v2226 = vpop.permute.xlu0 %2225
        %2229 = vset.pattern.permute.xlu0 16
        %2230 = vperm.xlu0 %2229, %v491
        %v2231 = vpop.permute.xlu0 %2230
        %2234 = vset.pattern.permute.xlu0 16
        %2235 = vperm.xlu0 %2234, %v492
        %v2236 = vpop.permute.xlu0 %2235
        %2239 = vset.pattern.permute.xlu0 16
        %2240 = vperm.xlu0 %2239, %v493
        %v2241 = vpop.permute.xlu0 %2240
        %2244 = vset.pattern.permute.xlu0 16
        %2245 = vperm.xlu0 %2244, %v494
        %v2246 = vpop.permute.xlu0 %2245
        %2249 = vset.pattern.permute.xlu0 16
        %2250 = vperm.xlu0 %2249, %v495
        %v2251 = vpop.permute.xlu0 %2250
        %2254 = vset.pattern.permute.xlu0 16
        %2255 = vperm.xlu0 %2254, %v496
        %v2256 = vpop.permute.xlu0 %2255
        %2259 = vset.pattern.permute.xlu0 16
        %2260 = vperm.xlu0 %2259, %v497
        %v2261 = vpop.permute.xlu0 %2260
        %2264 = vset.pattern.permute.xlu0 16
        %2265 = vperm.xlu0 %2264, %v498
        %v2266 = vpop.permute.xlu0 %2265
        %2269 = vset.pattern.permute.xlu0 16
        %2270 = vperm.xlu0 %2269, %v499
        %v2271 = vpop.permute.xlu0 %2270
        %2274 = vset.pattern.permute.xlu0 16
        %2275 = vperm.xlu0 %2274, %v500
        %v2276 = vpop.permute.xlu0 %2275
        %2279 = vset.pattern.permute.xlu0 16
        %2280 = vperm.xlu0 %2279, %v501
        %v2281 = vpop.permute.xlu0 %2280
        %2284 = vset.pattern.permute.xlu0 16
        %2285 = vperm.xlu0 %2284, %v502
        %v2286 = vpop.permute.xlu0 %2285
        %2289 = vset.pattern.permute.xlu0 16
        %2290 = vperm.xlu0 %2289, %v503
        %v2291 = vpop.permute.xlu0 %2290
        %2294 = vset.pattern.permute.xlu0 16
        %2295 = vperm.xlu0 %2294, %v504
        %v2296 = vpop.permute.xlu0 %2295
        %2299 = vset.pattern.permute.xlu0 16
        %2300 = vperm.xlu0 %2299, %v505
        %v2301 = vpop.permute.xlu0 %2300
        %2304 = vset.pattern.permute.xlu0 16
        %2305 = vperm.xlu0 %2304, %v506
        %v2306 = vpop.permute.xlu0 %2305
        %2309 = vset.pattern.permute.xlu0 16
        %2310 = vperm.xlu0 %2309, %v507
        %v2311 = vpop.permute.xlu0 %2310
        %2314 = vset.pattern.permute.xlu0 16
        %2315 = vperm.xlu0 %2314, %v508
        %v2316 = vpop.permute.xlu0 %2315
        %2319 = vset.pattern.permute.xlu0 16
        %2320 = vperm.xlu0 %2319, %v509
        %v2321 = vpop.permute.xlu0 %2320
        %2324 = vset.pattern.permute.xlu0 16
        %2325 = vperm.xlu0 %2324, %v510
        %v2326 = vpop.permute.xlu0 %2325
        %2329 = vset.pattern.permute.xlu0 16
        %2330 = vperm.xlu0 %2329, %v511
        %v2331 = vpop.permute.xlu0 %2330
        %2334 = vset.pattern.permute.xlu0 16
        %2335 = vperm.xlu0 %2334, %v512
        %v2336 = vpop.permute.xlu0 %2335
        %2339 = vset.pattern.permute.xlu0 16
        %2340 = vperm.xlu0 %2339, %v513
        %v2341 = vpop.permute.xlu0 %2340
        %2344 = vset.pattern.permute.xlu0 16
        %2345 = vperm.xlu0 %2344, %v514
        %v2346 = vpop.permute.xlu0 %2345
        %2349 = vset.pattern.permute.xlu0 16
        %2350 = vperm.xlu0 %2349, %v515
        %v2351 = vpop.permute.xlu0 %2350
        %2354 = vset.pattern.permute.xlu0 16
        %2355 = vperm.xlu0 %2354, %v516
        %v2356 = vpop.permute.xlu0 %2355
        %2359 = vset.pattern.permute.xlu0 16
        %2360 = vperm.xlu0 %2359, %v517
        %v2361 = vpop.permute.xlu0 %2360
        %2364 = vset.pattern.permute.xlu0 16
        %2365 = vperm.xlu0 %2364, %v518
        %v2366 = vpop.permute.xlu0 %2365
        %2369 = vset.pattern.permute.xlu0 16
        %2370 = vperm.xlu0 %2369, %v519
        %v2371 = vpop.permute.xlu0 %2370
        %2374 = vset.pattern.permute.xlu0 16
        %2375 = vperm.xlu0 %2374, %v520
        %v2376 = vpop.permute.xlu0 %2375
        %2379 = vset.pattern.permute.xlu0 16
        %2380 = vperm.xlu0 %2379, %v521
        %v2381 = vpop.permute.xlu0 %2380
        %2384 = vset.pattern.permute.xlu0 16
        %2385 = vperm.xlu0 %2384, %v522
        %v2386 = vpop.permute.xlu0 %2385
        %2389 = vset.pattern.permute.xlu0 16
        %2390 = vperm.xlu0 %2389, %v523
        %v2391 = vpop.permute.xlu0 %2390
        %2394 = vset.pattern.permute.xlu0 16
        %2395 = vperm.xlu0 %2394, %v524
        %v2396 = vpop.permute.xlu0 %2395
        %2399 = vset.pattern.permute.xlu0 16
        %2400 = vperm.xlu0 %2399, %v525
        %v2401 = vpop.permute.xlu0 %2400
        %2404 = vset.pattern.permute.xlu0 16
        %2405 = vperm.xlu0 %2404, %v526
        %v2406 = vpop.permute.xlu0 %2405
        %2409 = vset.pattern.permute.xlu0 16
        %2410 = vperm.xlu0 %2409, %v527
        %v2411 = vpop.permute.xlu0 %2410
        %2414 = vset.pattern.permute.xlu0 16
        %2415 = vperm.xlu0 %2414, %v528
        %v2416 = vpop.permute.xlu0 %2415
        %2419 = vset.pattern.permute.xlu0 16
        %2420 = vperm.xlu0 %2419, %v529
        %v2421 = vpop.permute.xlu0 %2420
        %2424 = vset.pattern.permute.xlu0 16
        %2425 = vperm.xlu0 %2424, %v530
        %v2426 = vpop.permute.xlu0 %2425
        %2429 = vset.pattern.permute.xlu0 16
        %2430 = vperm.xlu0 %2429, %v531
        %v2431 = vpop.permute.xlu0 %2430
        %2434 = vset.pattern.permute.xlu0 16
        %2435 = vperm.xlu0 %2434, %v532
        %v2436 = vpop.permute.xlu0 %2435
        %2439 = vset.pattern.permute.xlu0 16
        %2440 = vperm.xlu0 %2439, %v533
        %v2441 = vpop.permute.xlu0 %2440
        %2444 = vset.pattern.permute.xlu0 16
        %2445 = vperm.xlu0 %2444, %v534
        %v2446 = vpop.permute.xlu0 %2445
        %2449 = vset.pattern.permute.xlu0 16
        %2450 = vperm.xlu0 %2449, %v535
        %v2451 = vpop.permute.xlu0 %2450
        %2454 = vset.pattern.permute.xlu0 16
        %2455 = vperm.xlu0 %2454, %v536
        %v2456 = vpop.permute.xlu0 %2455
        %2459 = vset.pattern.permute.xlu0 16
        %2460 = vperm.xlu0 %2459, %v537
        %v2461 = vpop.permute.xlu0 %2460
        %2464 = vset.pattern.permute.xlu0 16
        %2465 = vperm.xlu0 %2464, %v538
        %v2466 = vpop.permute.xlu0 %2465
        %2469 = vset.pattern.permute.xlu0 16
        %2470 = vperm.xlu0 %2469, %v539
        %v2471 = vpop.permute.xlu0 %2470
        %2474 = vset.pattern.permute.xlu0 16
        %2475 = vperm.xlu0 %2474, %v540
        %v2476 = vpop.permute.xlu0 %2475
        %2479 = vset.pattern.permute.xlu0 16
        %2480 = vperm.xlu0 %2479, %v541
        %v2481 = vpop.permute.xlu0 %2480
        %2484 = vset.pattern.permute.xlu0 16
        %2485 = vperm.xlu0 %2484, %v542
        %v2486 = vpop.permute.xlu0 %2485
        %2489 = vset.pattern.permute.xlu0 16
        %2490 = vperm.xlu0 %2489, %v543
        %v2491 = vpop.permute.xlu0 %2490
        %2494 = vset.pattern.permute.xlu0 16
        %2495 = vperm.xlu0 %2494, %v544
        %v2496 = vpop.permute.xlu0 %2495
        %2499 = vset.pattern.permute.xlu0 16
        %2500 = vperm.xlu0 %2499, %v545
        %v2501 = vpop.permute.xlu0 %2500
        %2504 = vset.pattern.permute.xlu0 16
        %2505 = vperm.xlu0 %2504, %v546
        %v2506 = vpop.permute.xlu0 %2505
        %2509 = vset.pattern.permute.xlu0 16
        %2510 = vperm.xlu0 %2509, %v547
        %v2511 = vpop.permute.xlu0 %2510
        %2514 = vset.pattern.permute.xlu0 16
        %2515 = vperm.xlu0 %2514, %v548
        %v2516 = vpop.permute.xlu0 %2515
        %2519 = vset.pattern.permute.xlu0 16
        %2520 = vperm.xlu0 %2519, %v549
        %v2521 = vpop.permute.xlu0 %2520
        %v2523 = vmul.f32 %v2139, %v2206
        %v2524 = vmul.f32 %v2140, %v2211
        %v2525 = vmul.f32 %v2141, %v2216
        %v2526 = vmul.f32 %v2142, %v2221
        %v2527 = vmul.f32 %v2143, %v2226
        %v2528 = vmul.f32 %v2144, %v2231
        %v2529 = vmul.f32 %v2145, %v2236
        %v2530 = vmul.f32 %v2146, %v2241
        %v2531 = vmul.f32 %v2147, %v2246
        %v2532 = vmul.f32 %v2148, %v2251
        %v2533 = vmul.f32 %v2149, %v2256
        %v2534 = vmul.f32 %v2150, %v2261
        %v2535 = vmul.f32 %v2151, %v2266
        %v2536 = vmul.f32 %v2152, %v2271
        %v2537 = vmul.f32 %v2153, %v2276
        %v2538 = vmul.f32 %v2154, %v2281
        %v2539 = vmul.f32 %v2155, %v2286
        %v2540 = vmul.f32 %v2156, %v2291
        %v2541 = vmul.f32 %v2157, %v2296
        %v2542 = vmul.f32 %v2158, %v2301
        %v2543 = vmul.f32 %v2159, %v2306
        %v2544 = vmul.f32 %v2160, %v2311
        %v2545 = vmul.f32 %v2161, %v2316
        %v2546 = vmul.f32 %v2162, %v2321
        %v2547 = vmul.f32 %v2163, %v2326
        %v2548 = vmul.f32 %v2164, %v2331
        %v2549 = vmul.f32 %v2165, %v2336
        %v2550 = vmul.f32 %v2166, %v2341
        %v2551 = vmul.f32 %v2167, %v2346
        %v2552 = vmul.f32 %v2168, %v2351
        %v2553 = vmul.f32 %v2169, %v2356
        %v2554 = vmul.f32 %v2170, %v2361
        %v2555 = vmul.f32 %v2171, %v2366
        %v2556 = vmul.f32 %v2172, %v2371
        %v2557 = vmul.f32 %v2173, %v2376
        %v2558 = vmul.f32 %v2174, %v2381
        %v2559 = vmul.f32 %v2175, %v2386
        %v2560 = vmul.f32 %v2176, %v2391
        %v2561 = vmul.f32 %v2177, %v2396
        %v2562 = vmul.f32 %v2178, %v2401
        %v2563 = vmul.f32 %v2179, %v2406
        %v2564 = vmul.f32 %v2180, %v2411
        %v2565 = vmul.f32 %v2181, %v2416
        %v2566 = vmul.f32 %v2182, %v2421
        %v2567 = vmul.f32 %v2183, %v2426
        %v2568 = vmul.f32 %v2184, %v2431
        %v2569 = vmul.f32 %v2185, %v2436
        %v2570 = vmul.f32 %v2186, %v2441
        %v2571 = vmul.f32 %v2187, %v2446
        %v2572 = vmul.f32 %v2188, %v2451
        %v2573 = vmul.f32 %v2189, %v2456
        %v2574 = vmul.f32 %v2190, %v2461
        %v2575 = vmul.f32 %v2191, %v2466
        %v2576 = vmul.f32 %v2192, %v2471
        %v2577 = vmul.f32 %v2193, %v2476
        %v2578 = vmul.f32 %v2194, %v2481
        %v2579 = vmul.f32 %v2195, %v2486
        %v2580 = vmul.f32 %v2196, %v2491
        %v2581 = vmul.f32 %v2197, %v2496
        %v2582 = vmul.f32 %v2198, %v2501
        %v2583 = vmul.f32 %v2199, %v2506
        %v2584 = vmul.f32 %v2200, %v2511
        %v2585 = vmul.f32 %v2201, %v2516
        %v2586 = vmul.f32 %v2202, %v2521
        %v2587 = vsel %vm2007, 1, 0
        %v2588 = vsel %vm2008, 1, 0
        %v2589 = vsel %vm2009, 1, 0
        %v2590 = vsel %vm2010, 1, 0
        %v2591 = vsel %vm2011, 1, 0
        %v2592 = vsel %vm2012, 1, 0
        %v2593 = vsel %vm2013, 1, 0
        %v2594 = vsel %vm2014, 1, 0
        %v2595 = vsel %vm2015, 1, 0
        %v2596 = vsel %vm2016, 1, 0
        %v2597 = vsel %vm2017, 1, 0
        %v2598 = vsel %vm2018, 1, 0
        %v2599 = vsel %vm2019, 1, 0
        %v2600 = vsel %vm2020, 1, 0
        %v2601 = vsel %vm2021, 1, 0
        %v2602 = vsel %vm2022, 1, 0
        %v2603 = vsel %vm2023, 1, 0
        %v2604 = vsel %vm2024, 1, 0
        %v2605 = vsel %vm2025, 1, 0
        %v2606 = vsel %vm2026, 1, 0
        %v2607 = vsel %vm2027, 1, 0
        %v2608 = vsel %vm2028, 1, 0
        %v2609 = vsel %vm2029, 1, 0
        %v2610 = vsel %vm2030, 1, 0
        %v2611 = vsel %vm2031, 1, 0
        %v2612 = vsel %vm2032, 1, 0
        %v2613 = vsel %vm2033, 1, 0
        %v2614 = vsel %vm2034, 1, 0
        %v2615 = vsel %vm2035, 1, 0
        %v2616 = vsel %vm2036, 1, 0
        %v2617 = vsel %vm2037, 1, 0
        %v2618 = vsel %vm2038, 1, 0
        %v2619 = vsel %vm2039, 1, 0
        %v2620 = vsel %vm2040, 1, 0
        %v2621 = vsel %vm2041, 1, 0
        %v2622 = vsel %vm2042, 1, 0
        %v2623 = vsel %vm2043, 1, 0
        %v2624 = vsel %vm2044, 1, 0
        %v2625 = vsel %vm2045, 1, 0
        %v2626 = vsel %vm2046, 1, 0
        %v2627 = vsel %vm2047, 1, 0
        %v2628 = vsel %vm2048, 1, 0
        %v2629 = vsel %vm2049, 1, 0
        %v2630 = vsel %vm2050, 1, 0
        %v2631 = vsel %vm2051, 1, 0
        %v2632 = vsel %vm2052, 1, 0
        %v2633 = vsel %vm2053, 1, 0
        %v2634 = vsel %vm2054, 1, 0
        %v2635 = vsel %vm2055, 1, 0
        %v2636 = vsel %vm2056, 1, 0
        %v2637 = vsel %vm2057, 1, 0
        %v2638 = vsel %vm2058, 1, 0
        %v2639 = vsel %vm2059, 1, 0
        %v2640 = vsel %vm2060, 1, 0
        %v2641 = vsel %vm2061, 1, 0
        %v2642 = vsel %vm2062, 1, 0
        %v2643 = vsel %vm2063, 1, 0
        %v2644 = vsel %vm2064, 1, 0
        %v2645 = vsel %vm2065, 1, 0
        %v2646 = vsel %vm2066, 1, 0
        %v2647 = vsel %vm2067, 1, 0
        %v2648 = vsel %vm2068, 1, 0
        %v2649 = vsel %vm2069, 1, 0
        %v2650 = vsel %vm2070, 1, 0
        %vm2651 = vcmp.eq.s32.totalorder %v2587, 1
        %vm2652 = vcmp.eq.s32.totalorder %v2588, 1
        %vm2653 = vcmp.eq.s32.totalorder %v2589, 1
        %vm2654 = vcmp.eq.s32.totalorder %v2590, 1
        %vm2655 = vcmp.eq.s32.totalorder %v2591, 1
        %vm2656 = vcmp.eq.s32.totalorder %v2592, 1
        %vm2657 = vcmp.eq.s32.totalorder %v2593, 1
        %vm2658 = vcmp.eq.s32.totalorder %v2594, 1
        %vm2659 = vcmp.eq.s32.totalorder %v2595, 1
        %vm2660 = vcmp.eq.s32.totalorder %v2596, 1
        %vm2661 = vcmp.eq.s32.totalorder %v2597, 1
        %vm2662 = vcmp.eq.s32.totalorder %v2598, 1
        %vm2663 = vcmp.eq.s32.totalorder %v2599, 1
        %vm2664 = vcmp.eq.s32.totalorder %v2600, 1
        %vm2665 = vcmp.eq.s32.totalorder %v2601, 1
        %vm2666 = vcmp.eq.s32.totalorder %v2602, 1
        %vm2667 = vcmp.eq.s32.totalorder %v2603, 1
        %vm2668 = vcmp.eq.s32.totalorder %v2604, 1
        %vm2669 = vcmp.eq.s32.totalorder %v2605, 1
        %vm2670 = vcmp.eq.s32.totalorder %v2606, 1
        %vm2671 = vcmp.eq.s32.totalorder %v2607, 1
        %vm2672 = vcmp.eq.s32.totalorder %v2608, 1
        %vm2673 = vcmp.eq.s32.totalorder %v2609, 1
        %vm2674 = vcmp.eq.s32.totalorder %v2610, 1
        %vm2675 = vcmp.eq.s32.totalorder %v2611, 1
        %vm2676 = vcmp.eq.s32.totalorder %v2612, 1
        %vm2677 = vcmp.eq.s32.totalorder %v2613, 1
        %vm2678 = vcmp.eq.s32.totalorder %v2614, 1
        %vm2679 = vcmp.eq.s32.totalorder %v2615, 1
        %vm2680 = vcmp.eq.s32.totalorder %v2616, 1
        %vm2681 = vcmp.eq.s32.totalorder %v2617, 1
        %vm2682 = vcmp.eq.s32.totalorder %v2618, 1
        %vm2683 = vcmp.eq.s32.totalorder %v2619, 1
        %vm2684 = vcmp.eq.s32.totalorder %v2620, 1
        %vm2685 = vcmp.eq.s32.totalorder %v2621, 1
        %vm2686 = vcmp.eq.s32.totalorder %v2622, 1
        %vm2687 = vcmp.eq.s32.totalorder %v2623, 1
        %vm2688 = vcmp.eq.s32.totalorder %v2624, 1
        %vm2689 = vcmp.eq.s32.totalorder %v2625, 1
        %vm2690 = vcmp.eq.s32.totalorder %v2626, 1
        %vm2691 = vcmp.eq.s32.totalorder %v2627, 1
        %vm2692 = vcmp.eq.s32.totalorder %v2628, 1
        %vm2693 = vcmp.eq.s32.totalorder %v2629, 1
        %vm2694 = vcmp.eq.s32.totalorder %v2630, 1
        %vm2695 = vcmp.eq.s32.totalorder %v2631, 1
        %vm2696 = vcmp.eq.s32.totalorder %v2632, 1
        %vm2697 = vcmp.eq.s32.totalorder %v2633, 1
        %vm2698 = vcmp.eq.s32.totalorder %v2634, 1
        %vm2699 = vcmp.eq.s32.totalorder %v2635, 1
        %vm2700 = vcmp.eq.s32.totalorder %v2636, 1
        %vm2701 = vcmp.eq.s32.totalorder %v2637, 1
        %vm2702 = vcmp.eq.s32.totalorder %v2638, 1
        %vm2703 = vcmp.eq.s32.totalorder %v2639, 1
        %vm2704 = vcmp.eq.s32.totalorder %v2640, 1
        %vm2705 = vcmp.eq.s32.totalorder %v2641, 1
        %vm2706 = vcmp.eq.s32.totalorder %v2642, 1
        %vm2707 = vcmp.eq.s32.totalorder %v2643, 1
        %vm2708 = vcmp.eq.s32.totalorder %v2644, 1
        %vm2709 = vcmp.eq.s32.totalorder %v2645, 1
        %vm2710 = vcmp.eq.s32.totalorder %v2646, 1
        %vm2711 = vcmp.eq.s32.totalorder %v2647, 1
        %vm2712 = vcmp.eq.s32.totalorder %v2648, 1
        %vm2713 = vcmp.eq.s32.totalorder %v2649, 1
        %vm2714 = vcmp.eq.s32.totalorder %v2650, 1
        %v2715 = vsel %vm2651, %v2523, 0.0
        %v2716 = vsel %vm2652, %v2524, 0.0
        %v2717 = vsel %vm2653, %v2525, 0.0
        %v2718 = vsel %vm2654, %v2526, 0.0
        %v2719 = vsel %vm2655, %v2527, 0.0
        %v2720 = vsel %vm2656, %v2528, 0.0
        %v2721 = vsel %vm2657, %v2529, 0.0
        %v2722 = vsel %vm2658, %v2530, 0.0
        %v2723 = vsel %vm2659, %v2531, 0.0
        %v2724 = vsel %vm2660, %v2532, 0.0
        %v2725 = vsel %vm2661, %v2533, 0.0
        %v2726 = vsel %vm2662, %v2534, 0.0
        %v2727 = vsel %vm2663, %v2535, 0.0
        %v2728 = vsel %vm2664, %v2536, 0.0
        %v2729 = vsel %vm2665, %v2537, 0.0
        %v2730 = vsel %vm2666, %v2538, 0.0
        %v2731 = vsel %vm2667, %v2539, 0.0
        %v2732 = vsel %vm2668, %v2540, 0.0
        %v2733 = vsel %vm2669, %v2541, 0.0
        %v2734 = vsel %vm2670, %v2542, 0.0
        %v2735 = vsel %vm2671, %v2543, 0.0
        %v2736 = vsel %vm2672, %v2544, 0.0
        %v2737 = vsel %vm2673, %v2545, 0.0
        %v2738 = vsel %vm2674, %v2546, 0.0
        %v2739 = vsel %vm2675, %v2547, 0.0
        %v2740 = vsel %vm2676, %v2548, 0.0
        %v2741 = vsel %vm2677, %v2549, 0.0
        %v2742 = vsel %vm2678, %v2550, 0.0
        %v2743 = vsel %vm2679, %v2551, 0.0
        %v2744 = vsel %vm2680, %v2552, 0.0
        %v2745 = vsel %vm2681, %v2553, 0.0
        %v2746 = vsel %vm2682, %v2554, 0.0
        %v2747 = vsel %vm2683, %v2555, 0.0
        %v2748 = vsel %vm2684, %v2556, 0.0
        %v2749 = vsel %vm2685, %v2557, 0.0
        %v2750 = vsel %vm2686, %v2558, 0.0
        %v2751 = vsel %vm2687, %v2559, 0.0
        %v2752 = vsel %vm2688, %v2560, 0.0
        %v2753 = vsel %vm2689, %v2561, 0.0
        %v2754 = vsel %vm2690, %v2562, 0.0
        %v2755 = vsel %vm2691, %v2563, 0.0
        %v2756 = vsel %vm2692, %v2564, 0.0
        %v2757 = vsel %vm2693, %v2565, 0.0
        %v2758 = vsel %vm2694, %v2566, 0.0
        %v2759 = vsel %vm2695, %v2567, 0.0
        %v2760 = vsel %vm2696, %v2568, 0.0
        %v2761 = vsel %vm2697, %v2569, 0.0
        %v2762 = vsel %vm2698, %v2570, 0.0
        %v2763 = vsel %vm2699, %v2571, 0.0
        %v2764 = vsel %vm2700, %v2572, 0.0
        %v2765 = vsel %vm2701, %v2573, 0.0
        %v2766 = vsel %vm2702, %v2574, 0.0
        %v2767 = vsel %vm2703, %v2575, 0.0
        %v2768 = vsel %vm2704, %v2576, 0.0
        %v2769 = vsel %vm2705, %v2577, 0.0
        %v2770 = vsel %vm2706, %v2578, 0.0
        %v2771 = vsel %vm2707, %v2579, 0.0
        %v2772 = vsel %vm2708, %v2580, 0.0
        %v2773 = vsel %vm2709, %v2581, 0.0
        %v2774 = vsel %vm2710, %v2582, 0.0
        %v2775 = vsel %vm2711, %v2583, 0.0
        %v2776 = vsel %vm2712, %v2584, 0.0
        %v2777 = vsel %vm2713, %v2585, 0.0
        %v2778 = vsel %vm2714, %v2586, 0.0
        %v2779 = vsel %vm2007, %v486, 0.0
        %v2780 = vsel %vm2008, %v487, 0.0
        %v2781 = vsel %vm2009, %v488, 0.0
        %v2782 = vsel %vm2010, %v489, 0.0
        %v2783 = vsel %vm2011, %v490, 0.0
        %v2784 = vsel %vm2012, %v491, 0.0
        %v2785 = vsel %vm2013, %v492, 0.0
        %v2786 = vsel %vm2014, %v493, 0.0
        %v2787 = vsel %vm2015, %v494, 0.0
        %v2788 = vsel %vm2016, %v495, 0.0
        %v2789 = vsel %vm2017, %v496, 0.0
        %v2790 = vsel %vm2018, %v497, 0.0
        %v2791 = vsel %vm2019, %v498, 0.0
        %v2792 = vsel %vm2020, %v499, 0.0
        %v2793 = vsel %vm2021, %v500, 0.0
        %v2794 = vsel %vm2022, %v501, 0.0
        %v2795 = vsel %vm2023, %v502, 0.0
        %v2796 = vsel %vm2024, %v503, 0.0
        %v2797 = vsel %vm2025, %v504, 0.0
        %v2798 = vsel %vm2026, %v505, 0.0
        %v2799 = vsel %vm2027, %v506, 0.0
        %v2800 = vsel %vm2028, %v507, 0.0
        %v2801 = vsel %vm2029, %v508, 0.0
        %v2802 = vsel %vm2030, %v509, 0.0
        %v2803 = vsel %vm2031, %v510, 0.0
        %v2804 = vsel %vm2032, %v511, 0.0
        %v2805 = vsel %vm2033, %v512, 0.0
        %v2806 = vsel %vm2034, %v513, 0.0
        %v2807 = vsel %vm2035, %v514, 0.0
        %v2808 = vsel %vm2036, %v515, 0.0
        %v2809 = vsel %vm2037, %v516, 0.0
        %v2810 = vsel %vm2038, %v517, 0.0
        %v2811 = vsel %vm2039, %v518, 0.0
        %v2812 = vsel %vm2040, %v519, 0.0
        %v2813 = vsel %vm2041, %v520, 0.0
        %v2814 = vsel %vm2042, %v521, 0.0
        %v2815 = vsel %vm2043, %v522, 0.0
        %v2816 = vsel %vm2044, %v523, 0.0
        %v2817 = vsel %vm2045, %v524, 0.0
        %v2818 = vsel %vm2046, %v525, 0.0
        %v2819 = vsel %vm2047, %v526, 0.0
        %v2820 = vsel %vm2048, %v527, 0.0
        %v2821 = vsel %vm2049, %v528, 0.0
        %v2822 = vsel %vm2050, %v529, 0.0
        %v2823 = vsel %vm2051, %v530, 0.0
        %v2824 = vsel %vm2052, %v531, 0.0
        %v2825 = vsel %vm2053, %v532, 0.0
        %v2826 = vsel %vm2054, %v533, 0.0
        %v2827 = vsel %vm2055, %v534, 0.0
        %v2828 = vsel %vm2056, %v535, 0.0
        %v2829 = vsel %vm2057, %v536, 0.0
        %v2830 = vsel %vm2058, %v537, 0.0
        %v2831 = vsel %vm2059, %v538, 0.0
        %v2832 = vsel %vm2060, %v539, 0.0
        %v2833 = vsel %vm2061, %v540, 0.0
        %v2834 = vsel %vm2062, %v541, 0.0
        %v2835 = vsel %vm2063, %v542, 0.0
        %v2836 = vsel %vm2064, %v543, 0.0
        %v2837 = vsel %vm2065, %v544, 0.0
        %v2838 = vsel %vm2066, %v545, 0.0
        %v2839 = vsel %vm2067, %v546, 0.0
        %v2840 = vsel %vm2068, %v547, 0.0
        %v2841 = vsel %vm2069, %v548, 0.0
        %v2842 = vsel %vm2070, %v549, 0.0
        %v2843 = vld [vmem:[#allocation2] sm:$0x1]
        %vm2844 = vcmask 523264
        %v2845 = vsel %vm2844, %v2715, 0.0
        %v2846 = vsel %vm2844, %v2716, 0.0
        %v2847 = vadd.f32 %v2845, %v2846
        %v2848 = vsel %vm2844, %v2717, 0.0
        %v2849 = vadd.f32 %v2847, %v2848
        %v2850 = vsel %vm2844, %v2718, 0.0
        %v2851 = vadd.f32 %v2849, %v2850
        %v2852 = vsel %vm2844, %v2719, 0.0
        %v2853 = vadd.f32 %v2851, %v2852
        %v2854 = vsel %vm2844, %v2720, 0.0
        %v2855 = vadd.f32 %v2853, %v2854
        %v2856 = vsel %vm2844, %v2721, 0.0
        %v2857 = vadd.f32 %v2855, %v2856
        %v2858 = vsel %vm2844, %v2722, 0.0
        %v2859 = vadd.f32 %v2857, %v2858
        %v2860 = vsel %vm2844, %v2723, 0.0
        %v2861 = vadd.f32 %v2859, %v2860
        %v2862 = vsel %vm2844, %v2724, 0.0
        %v2863 = vadd.f32 %v2861, %v2862
        %v2864 = vsel %vm2844, %v2725, 0.0
        %v2865 = vadd.f32 %v2863, %v2864
        %v2866 = vsel %vm2844, %v2726, 0.0
        %v2867 = vadd.f32 %v2865, %v2866
        %v2868 = vsel %vm2844, %v2727, 0.0
        %v2869 = vadd.f32 %v2867, %v2868
        %v2870 = vsel %vm2844, %v2728, 0.0
        %v2871 = vadd.f32 %v2869, %v2870
        %v2872 = vsel %vm2844, %v2729, 0.0
        %v2873 = vadd.f32 %v2871, %v2872
        %v2874 = vsel %vm2844, %v2730, 0.0
        %v2875 = vadd.f32 %v2873, %v2874
        %v2876 = vsel %vm2844, %v2731, 0.0
        %v2877 = vadd.f32 %v2875, %v2876
        %v2878 = vsel %vm2844, %v2732, 0.0
        %v2879 = vadd.f32 %v2877, %v2878
        %v2880 = vsel %vm2844, %v2733, 0.0
        %v2881 = vadd.f32 %v2879, %v2880
        %v2882 = vsel %vm2844, %v2734, 0.0
        %v2883 = vadd.f32 %v2881, %v2882
        %v2884 = vsel %vm2844, %v2735, 0.0
        %v2885 = vadd.f32 %v2883, %v2884
        %v2886 = vsel %vm2844, %v2736, 0.0
        %v2887 = vadd.f32 %v2885, %v2886
        %v2888 = vsel %vm2844, %v2737, 0.0
        %v2889 = vadd.f32 %v2887, %v2888
        %v2890 = vsel %vm2844, %v2738, 0.0
        %v2891 = vadd.f32 %v2889, %v2890
        %v2892 = vsel %vm2844, %v2739, 0.0
        %v2893 = vadd.f32 %v2891, %v2892
        %v2894 = vsel %vm2844, %v2740, 0.0
        %v2895 = vadd.f32 %v2893, %v2894
        %v2896 = vsel %vm2844, %v2741, 0.0
        %v2897 = vadd.f32 %v2895, %v2896
        %v2898 = vsel %vm2844, %v2742, 0.0
        %v2899 = vadd.f32 %v2897, %v2898
        %v2900 = vsel %vm2844, %v2743, 0.0
        %v2901 = vadd.f32 %v2899, %v2900
        %v2902 = vsel %vm2844, %v2744, 0.0
        %v2903 = vadd.f32 %v2901, %v2902
        %v2904 = vsel %vm2844, %v2745, 0.0
        %v2905 = vadd.f32 %v2903, %v2904
        %v2906 = vsel %vm2844, %v2746, 0.0
        %v2907 = vadd.f32 %v2905, %v2906
        %v2908 = vsel %vm2844, %v2747, 0.0
        %v2909 = vadd.f32 %v2907, %v2908
        %v2910 = vsel %vm2844, %v2748, 0.0
        %v2911 = vadd.f32 %v2909, %v2910
        %v2912 = vsel %vm2844, %v2749, 0.0
        %v2913 = vadd.f32 %v2911, %v2912
        %v2914 = vsel %vm2844, %v2750, 0.0
        %v2915 = vadd.f32 %v2913, %v2914
        %v2916 = vsel %vm2844, %v2751, 0.0
        %v2917 = vadd.f32 %v2915, %v2916
        %v2918 = vsel %vm2844, %v2752, 0.0
        %v2919 = vadd.f32 %v2917, %v2918
        %v2920 = vsel %vm2844, %v2753, 0.0
        %v2921 = vadd.f32 %v2919, %v2920
        %v2922 = vsel %vm2844, %v2754, 0.0
        %v2923 = vadd.f32 %v2921, %v2922
        %v2924 = vsel %vm2844, %v2755, 0.0
        %v2925 = vadd.f32 %v2923, %v2924
        %v2926 = vsel %vm2844, %v2756, 0.0
        %v2927 = vadd.f32 %v2925, %v2926
        %v2928 = vsel %vm2844, %v2757, 0.0
        %v2929 = vadd.f32 %v2927, %v2928
        %v2930 = vsel %vm2844, %v2758, 0.0
        %v2931 = vadd.f32 %v2929, %v2930
        %v2932 = vsel %vm2844, %v2759, 0.0
        %v2933 = vadd.f32 %v2931, %v2932
        %v2934 = vsel %vm2844, %v2760, 0.0
        %v2935 = vadd.f32 %v2933, %v2934
        %v2936 = vsel %vm2844, %v2761, 0.0
        %v2937 = vadd.f32 %v2935, %v2936
        %v2938 = vsel %vm2844, %v2762, 0.0
        %v2939 = vadd.f32 %v2937, %v2938
        %v2940 = vsel %vm2844, %v2763, 0.0
        %v2941 = vadd.f32 %v2939, %v2940
        %v2942 = vsel %vm2844, %v2764, 0.0
        %v2943 = vadd.f32 %v2941, %v2942
        %v2944 = vsel %vm2844, %v2765, 0.0
        %v2945 = vadd.f32 %v2943, %v2944
        %v2946 = vsel %vm2844, %v2766, 0.0
        %v2947 = vadd.f32 %v2945, %v2946
        %v2948 = vsel %vm2844, %v2767, 0.0
        %v2949 = vadd.f32 %v2947, %v2948
        %v2950 = vsel %vm2844, %v2768, 0.0
        %v2951 = vadd.f32 %v2949, %v2950
        %v2952 = vsel %vm2844, %v2769, 0.0
        %v2953 = vadd.f32 %v2951, %v2952
        %v2954 = vsel %vm2844, %v2770, 0.0
        %v2955 = vadd.f32 %v2953, %v2954
        %v2956 = vsel %vm2844, %v2771, 0.0
        %v2957 = vadd.f32 %v2955, %v2956
        %v2958 = vsel %vm2844, %v2772, 0.0
        %v2959 = vadd.f32 %v2957, %v2958
        %v2960 = vsel %vm2844, %v2773, 0.0
        %v2961 = vadd.f32 %v2959, %v2960
        %v2962 = vsel %vm2844, %v2774, 0.0
        %v2963 = vadd.f32 %v2961, %v2962
        %v2964 = vsel %vm2844, %v2775, 0.0
        %v2965 = vadd.f32 %v2963, %v2964
        %v2966 = vsel %vm2844, %v2776, 0.0
        %v2967 = vadd.f32 %v2965, %v2966
        %v2968 = vsel %vm2844, %v2777, 0.0
        %v2969 = vadd.f32 %v2967, %v2968
        %v2970 = vsel %vm2844, %v2778, 0.0
        %v2971 = vadd.f32 %v2969, %v2970
        %v2972 = vrot.slane %v2971, 4
        %v2973 = vadd.f32 %v2971, %v2972
        %v2974 = vrot.slane %v2973, 2
        %v2975 = vadd.f32 %v2973, %v2974
        %v2976 = vrot.slane %v2975, 1
        %v2977 = vadd.f32 %v2975, %v2976
        %v2978 = vadd.f32 %v2843, %v2977
        %vm2979 = vcmask 516096
        %2980 = vst.msk [vmem:[#allocation2] sm:$0x1] %vm2979, %v2978
        %v2981 = vld [vmem:[#allocation3] sm:$0x1]
        %vm2982 = vcmask 138368
        %v2983 = vsel %vm2982, %v2779, 0.0
        %v2984 = vsel %vm2982, %v2780, 0.0
        %v2985 = vadd.f32 %v2983, %v2984
        %v2986 = vsel %vm2982, %v2781, 0.0
        %v2987 = vadd.f32 %v2985, %v2986
        %v2988 = vsel %vm2982, %v2782, 0.0
        %v2989 = vadd.f32 %v2987, %v2988
        %v2990 = vsel %vm2982, %v2783, 0.0
        %v2991 = vadd.f32 %v2989, %v2990
        %v2992 = vsel %vm2982, %v2784, 0.0
        %v2993 = vadd.f32 %v2991, %v2992
        %v2994 = vsel %vm2982, %v2785, 0.0
        %v2995 = vadd.f32 %v2993, %v2994
        %v2996 = vsel %vm2982, %v2786, 0.0
        %v2997 = vadd.f32 %v2995, %v2996
        %v2998 = vsel %vm2982, %v2787, 0.0
        %v2999 = vadd.f32 %v2997, %v2998
        %v3000 = vsel %vm2982, %v2788, 0.0
        %v3001 = vadd.f32 %v2999, %v3000
        %v3002 = vsel %vm2982, %v2789, 0.0
        %v3003 = vadd.f32 %v3001, %v3002
        %v3004 = vsel %vm2982, %v2790, 0.0
        %v3005 = vadd.f32 %v3003, %v3004
        %v3006 = vsel %vm2982, %v2791, 0.0
        %v3007 = vadd.f32 %v3005, %v3006
        %v3008 = vsel %vm2982, %v2792, 0.0
        %v3009 = vadd.f32 %v3007, %v3008
        %v3010 = vsel %vm2982, %v2793, 0.0
        %v3011 = vadd.f32 %v3009, %v3010
        %v3012 = vsel %vm2982, %v2794, 0.0
        %v3013 = vadd.f32 %v3011, %v3012
        %v3014 = vsel %vm2982, %v2795, 0.0
        %v3015 = vadd.f32 %v3013, %v3014
        %v3016 = vsel %vm2982, %v2796, 0.0
        %v3017 = vadd.f32 %v3015, %v3016
        %v3018 = vsel %vm2982, %v2797, 0.0
        %v3019 = vadd.f32 %v3017, %v3018
        %v3020 = vsel %vm2982, %v2798, 0.0
        %v3021 = vadd.f32 %v3019, %v3020
        %v3022 = vsel %vm2982, %v2799, 0.0
        %v3023 = vadd.f32 %v3021, %v3022
        %v3024 = vsel %vm2982, %v2800, 0.0
        %v3025 = vadd.f32 %v3023, %v3024
        %v3026 = vsel %vm2982, %v2801, 0.0
        %v3027 = vadd.f32 %v3025, %v3026
        %v3028 = vsel %vm2982, %v2802, 0.0
        %v3029 = vadd.f32 %v3027, %v3028
        %v3030 = vsel %vm2982, %v2803, 0.0
        %v3031 = vadd.f32 %v3029, %v3030
        %v3032 = vsel %vm2982, %v2804, 0.0
        %v3033 = vadd.f32 %v3031, %v3032
        %v3034 = vsel %vm2982, %v2805, 0.0
        %v3035 = vadd.f32 %v3033, %v3034
        %v3036 = vsel %vm2982, %v2806, 0.0
        %v3037 = vadd.f32 %v3035, %v3036
        %v3038 = vsel %vm2982, %v2807, 0.0
        %v3039 = vadd.f32 %v3037, %v3038
        %v3040 = vsel %vm2982, %v2808, 0.0
        %v3041 = vadd.f32 %v3039, %v3040
        %v3042 = vsel %vm2982, %v2809, 0.0
        %v3043 = vadd.f32 %v3041, %v3042
        %v3044 = vsel %vm2982, %v2810, 0.0
        %v3045 = vadd.f32 %v3043, %v3044
        %v3046 = vsel %vm2982, %v2811, 0.0
        %v3047 = vadd.f32 %v3045, %v3046
        %v3048 = vsel %vm2982, %v2812, 0.0
        %v3049 = vadd.f32 %v3047, %v3048
        %v3050 = vsel %vm2982, %v2813, 0.0
        %v3051 = vadd.f32 %v3049, %v3050
        %v3052 = vsel %vm2982, %v2814, 0.0
        %v3053 = vadd.f32 %v3051, %v3052
        %v3054 = vsel %vm2982, %v2815, 0.0
        %v3055 = vadd.f32 %v3053, %v3054
        %v3056 = vsel %vm2982, %v2816, 0.0
        %v3057 = vadd.f32 %v3055, %v3056
        %v3058 = vsel %vm2982, %v2817, 0.0
        %v3059 = vadd.f32 %v3057, %v3058
        %v3060 = vsel %vm2982, %v2818, 0.0
        %v3061 = vadd.f32 %v3059, %v3060
        %v3062 = vsel %vm2982, %v2819, 0.0
        %v3063 = vadd.f32 %v3061, %v3062
        %v3064 = vsel %vm2982, %v2820, 0.0
        %v3065 = vadd.f32 %v3063, %v3064
        %v3066 = vsel %vm2982, %v2821, 0.0
        %v3067 = vadd.f32 %v3065, %v3066
        %v3068 = vsel %vm2982, %v2822, 0.0
        %v3069 = vadd.f32 %v3067, %v3068
        %v3070 = vsel %vm2982, %v2823, 0.0
        %v3071 = vadd.f32 %v3069, %v3070
        %v3072 = vsel %vm2982, %v2824, 0.0
        %v3073 = vadd.f32 %v3071, %v3072
        %v3074 = vsel %vm2982, %v2825, 0.0
        %v3075 = vadd.f32 %v3073, %v3074
        %v3076 = vsel %vm2982, %v2826, 0.0
        %v3077 = vadd.f32 %v3075, %v3076
        %v3078 = vsel %vm2982, %v2827, 0.0
        %v3079 = vadd.f32 %v3077, %v3078
        %v3080 = vsel %vm2982, %v2828, 0.0
        %v3081 = vadd.f32 %v3079, %v3080
        %v3082 = vsel %vm2982, %v2829, 0.0
        %v3083 = vadd.f32 %v3081, %v3082
        %v3084 = vsel %vm2982, %v2830, 0.0
        %v3085 = vadd.f32 %v3083, %v3084
        %v3086 = vsel %vm2982, %v2831, 0.0
        %v3087 = vadd.f32 %v3085, %v3086
        %v3088 = vsel %vm2982, %v2832, 0.0
        %v3089 = vadd.f32 %v3087, %v3088
        %v3090 = vsel %vm2982, %v2833, 0.0
        %v3091 = vadd.f32 %v3089, %v3090
        %v3092 = vsel %vm2982, %v2834, 0.0
        %v3093 = vadd.f32 %v3091, %v3092
        %v3094 = vsel %vm2982, %v2835, 0.0
        %v3095 = vadd.f32 %v3093, %v3094
        %v3096 = vsel %vm2982, %v2836, 0.0
        %v3097 = vadd.f32 %v3095, %v3096
        %v3098 = vsel %vm2982, %v2837, 0.0
        %v3099 = vadd.f32 %v3097, %v3098
        %v3100 = vsel %vm2982, %v2838, 0.0
        %v3101 = vadd.f32 %v3099, %v3100
        %v3102 = vsel %vm2982, %v2839, 0.0
        %v3103 = vadd.f32 %v3101, %v3102
        %v3104 = vsel %vm2982, %v2840, 0.0
        %v3105 = vadd.f32 %v3103, %v3104
        %v3106 = vsel %vm2982, %v2841, 0.0
        %v3107 = vadd.f32 %v3105, %v3106
        %v3108 = vsel %vm2982, %v2842, 0.0
        %v3109 = vadd.f32 %v3107, %v3108
        %v3110 = vrot.slane %v3109, 4
        %v3111 = vadd.f32 %v3109, %v3110
        %v3112 = vrot.slane %v3111, 2
        %v3113 = vadd.f32 %v3111, %v3112
        %v3114 = vrot.slane %v3113, 1
        %v3115 = vadd.f32 %v3113, %v3114
        %3117 = vrot.lane.b32.xlu0 %v3115, 112
        %v3118 = vpop.permute.xlu0 %3117
        %v3120 = vadd.f32 %v2981, %v3118
        %vm3121 = vcmask 0
        %3122 = vst.msk [vmem:[#allocation3] sm:$0x1] %vm3121, %v3120
        %p3123 = scmp.eq.s32.totalorder %s36, 3
        // Predicated region
        $region57: #{tpu_custom_call.1} parent=51 // pred_check
          %p3124 = pneg %p3123
        $region58: #{tpu_custom_call.1} parent=51 // pred_check_branch
          %3126 = sbr.rel (%p3124) target = $region60
        $region59: #{tpu_custom_call.1} parent=51 // pred_region
          %v3127 = vld [vmem:[#allocation2] sm:$0x1]
          %v3129 = vperm.slane %v3127, 0
          %3131 = vst.msk [vmem:[%s426] sm:$0xff] %vm2844, %v3129
          %v3132 = vld [vmem:[#allocation3] sm:$0x1]
          %v3134 = vperm.slane %v3132, 0
          %3135 = vset.pattern.permute.xlu0 0
          %3136 = vperm.xlu0 %3135, %v3134
          %v3137 = vpop.permute.xlu0 %3136
          %3139 = vst.msk [vmem:[%s433] sm:$0xff] %vm2844, %v3137
        $region60: #{tpu_custom_call.1} parent=51 // pred_fallthru
          _
        %s3140 = sand.u32 %s245, 1
        %s3141 = scalar_lea.sflag [#allocation7], %s3140
        %s3142 = sand.u32 %s245, 1
        %s3143 = smul.addr %s3142, 8
        %s3144 = scalar_lea.vmem [#allocation6], %s3143
        %s3145 = sand.u32 %s271, 1
        %s3146 = scalar_lea.sflag [#allocation9], %s3145
        %s3147 = sand.u32 %s271, 1
        %s3148 = smul.addr %s3147, 8
        %s3149 = scalar_lea.vmem [#allocation8], %s3148
        // Predicated region
        $region61: #{tpu_custom_call.1} parent=51 // pred_check
          %p3150 = pneg %p255
        $region62: #{tpu_custom_call.1} parent=51 // pred_check_branch
          %3152 = sbr.rel (%p3150) target = $region64
        $region63: #{tpu_custom_call.1} parent=51 // pred_region
          %3154 = vsyncadd %s3141, 0
          %s3155 = smul.addr %s35, 8
          %s3156 = scalar_lea.hbm %s8, %s3155
          %s3158 = sshll.u32 %s3144, 4
          %s3159 = int_to_ptr.vmem [resolvable:$true] %s3158
          %s3160 = sshll.u32 %s3156, 4
          %s3161 = int_to_ptr.hbm [resolvable:$true] %s3160
          %3163 = dma.vmem_to_hbm [thread:$0]  %s3159, 128, %s3161, %s3141
        $region64: #{tpu_custom_call.1} parent=51 // pred_fallthru
          _
        // Predicated region
        $region65: #{tpu_custom_call.1} parent=51 // pred_check
          %p3164 = pneg %p281
        $region66: #{tpu_custom_call.1} parent=51 // pred_check_branch
          %3166 = sbr.rel (%p3164) target = $region68
        $region67: #{tpu_custom_call.1} parent=51 // pred_region
          %3168 = vsyncadd %s3146, 0
          %s3169 = smul.addr %s35, 8
          %s3170 = scalar_lea.hbm %s9, %s3169
          %s3172 = sshll.u32 %s3149, 4
          %s3173 = int_to_ptr.vmem [resolvable:$true] %s3172
          %s3174 = sshll.u32 %s3170, 4
          %s3175 = int_to_ptr.hbm [resolvable:$true] %s3174
          %3177 = dma.vmem_to_hbm [thread:$0]  %s3173, 128, %s3175, %s3146
        $region68: #{tpu_custom_call.1} parent=51 // pred_fallthru
          _
      $region52: #{tpu_custom_call.1} parent=5 // pred_fallthru
        _
      %p3178 = scmp.le.s32.totalorder 2, %s26
      // Predicated region
      $region69: #{tpu_custom_call.1} parent=5 // pred_check
        %p3179 = pneg %p3178
      $region70: #{tpu_custom_call.1} parent=5 // pred_check_branch
        %3181 = sbr.rel (%p3179) target = $region72
      $region71: #{tpu_custom_call.1} parent=5 // pred_region
        %s3182 = ssub.s32 %s26, 2
        // Predicated region
        $region73: #{tpu_custom_call.1} parent=71 // pred_check
          %p3183 = pneg %p261
        $region74: #{tpu_custom_call.1} parent=71 // pred_check_branch
          %3185 = sbr.rel (%p3183) target = $region76
        $region75: #{tpu_custom_call.1} parent=71 // pred_region
          %s3186 = sand.u32 %s246, 1
          %s3187 = scalar_lea.sflag [#allocation7], %s3186
          %s3188 = sand.u32 %s246, 1
          %s3189 = smul.addr %s3188, 8
          %s3190 = scalar_lea.vmem [#allocation6], %s3189
          %3192 = dma.done %s3187, 128
        $region76: #{tpu_custom_call.1} parent=71 // pred_fallthru
          _
        // Predicated region
        $region77: #{tpu_custom_call.1} parent=71 // pred_check
          %p3193 = pneg %p287
        $region78: #{tpu_custom_call.1} parent=71 // pred_check_branch
          %3195 = sbr.rel (%p3193) target = $region80
        $region79: #{tpu_custom_call.1} parent=71 // pred_region
          %s3196 = sand.u32 %s272, 1
          %s3197 = scalar_lea.sflag [#allocation9], %s3196
          %s3198 = sand.u32 %s272, 1
          %s3199 = smul.addr %s3198, 8
          %s3200 = scalar_lea.vmem [#allocation8], %s3199
          %3202 = dma.done %s3197, 128
        $region80: #{tpu_custom_call.1} parent=71 // pred_fallthru
          _
      $region72: #{tpu_custom_call.1} parent=5 // pred_fallthru
        _
    $region6: #{tpu_custom_call.1} parent=1 // loop_footer
      %s30 = sadd.s32 1, %s26
    $region7: #{tpu_custom_call.1} parent=1 // loop_footer_branch
      %25 = sbr.rel target = $region3
    $region8: #{tpu_custom_call.1} parent=1 // loop_exit
      _
    %3203 = vsyncpa [#allocation7], 1
    %s3204 = scalar_lea.sflag [#allocation7], 1
    %3205 = vsyncpa %s3204, 1
    %3206 = vsyncpa [#allocation9], 1
    %s3207 = scalar_lea.sflag [#allocation9], 1
    %3208 = vsyncpa %s3207, 1

</llo_original>
